<compile_context>
chip_gen: v7x
topology: tpu7x:2x2x1
jax: 0.10.0
libtpu: 0.0.40
codegen_flags: <defaults>
</compile_context>

<pallas_src>
import functools

import numpy as np
import jax
import jax.numpy as jnp
from jax.experimental import pallas as pl
from jax.experimental.pallas import tpu as pltpu

# ----------------------------- small config ---------------------------------
CFG = dict(
    vocab=16, d_model=32, n_head=2, d_k=16, d_v=16, d_inner=64,
    enc_layers=1, dec_layers=1, kernel=(9, 1), max_seq_len=64,
    n_mel=8, var_filter=32, var_kernel=3, n_bins=16,
    n_speakers=4, n_ages=4, age_hidden=16,
    postnet_dim=32, postnet_k=5, postnet_layers=5,
    # 1 = single grid step (best on v5e/v6e, 1 TensorCore).  Set to 2 on v7x so
    # each TensorCore takes half the batch via the "parallel" grid axis.
    batch_groups=1,
)

_BF16 = jnp.bfloat16
_F32 = jnp.float32
_PAD_ROWS = 8  # sublane-aligned zero pad so in-kernel sublane concats stay aligned


# --------------------------- in-kernel helpers -------------------------------

def _mm(a, b):
    """bf16 MXU matmul with f32 accumulation: (m,k)@(k,n)."""
    return jax.lax.dot_general(a.astype(_BF16), b.astype(_BF16),
                               (((1,), (0,)), ((), ())),
                               preferred_element_type=_F32)


def _mm_nt(a, b):
    """(m,k) @ (n,k)^T -> (m,n); bf16 in / f32 accumulate (no explicit transpose)."""
    return jax.lax.dot_general(a.astype(_BF16), b.astype(_BF16),
                               (((1,), (1,)), ((), ())),
                               preferred_element_type=_F32)


def _layer_norm(x, g, b, eps=1e-5):
    """f32 LayerNorm over the last axis (VPU/EUP math kept in f32 for v5e)."""
    mu = jnp.mean(x, axis=-1, keepdims=True)
    var = jnp.mean(jnp.square(x - mu), axis=-1, keepdims=True)
    return (x - mu) * jax.lax.rsqrt(var + eps) * g + b


def _conv_im2col(y, w_ref, b_ref, k):
    """'same' Conv1d over time via an in-register im2col and ONE MXU matmul.

    y: (T, Cin) f32 value.  w_ref: (k*Cin, Cout) bf16 (tap-major).  b_ref: (1, Cout).
    The k shifted copies of y are built with an 8-row (sublane-aligned) zero pad
    plus static slices and concatenated along features -> (T, k*Cin); no (T,T)
    selection matrices and no HBM im2col.
    """
    if k == 1:
        return _mm(y, w_ref[...]) + b_ref[...]
    T, cin = y.shape
    pad = (k - 1) // 2
    z = jnp.zeros((_PAD_ROWS, cin), y.dtype)
    yp = jnp.concatenate([z, y, z], axis=0)            # (T + 16, Cin), aligned concat
    taps = [jax.lax.slice_in_dim(yp, _PAD_ROWS - pad + t, _PAD_ROWS - pad + t + T, axis=0)
            for t in range(k)]
    im2col = jnp.concatenate(taps, axis=-1)            # (T, k*Cin)
    return _mm(im2col, w_ref[...]) + b_ref[...]


# ----------------------------- fused kernels ---------------------------------


def _fft_block_kernel(lens_ref, x_ref,
                      wqkv_ref, bqkv_ref, wo_ref, bo_ref, ln1g_ref, ln1b_ref,
                      c1w_ref, c1b_ref, c2w_ref, c2b_ref, ln2g_ref, ln2b_ref,
                      o_ref, *, n_head, d_head, k1, k2, scale):
    """One full FFT block (MHA + conv-FFN) for one batch group, fully fused.

    Masks are rebuilt in-kernel from SMEM sequence lengths (scalar prefetch)."""
    b_blk, T, _ = x_ref.shape
    base = pl.program_id(0) * b_blk
    t_col = jax.lax.broadcasted_iota(jnp.int32, (T, 1), 0)      # query positions
    key_col = jax.lax.broadcasted_iota(jnp.int32, (T, T), 1)    # key positions

    for b in range(b_blk):                       # static unroll, batch is tiny
        x = x_ref[b].astype(_F32)                # (T, D)
        L = lens_ref[base + b]
        pad_q = t_col >= L                       # (T, 1) True = padded query row
        key_pad = key_col >= L                   # (T, T) True = padded key

        # ---- self-attention: ONE fused QKV matmul, heads sliced from lanes ----
        qkv = _mm(x, wqkv_ref[...]) + bqkv_ref[...]              # (T, 3*H*dh)
        ctxs = []
        for h in range(n_head):
            q = qkv[:, h * d_head:(h + 1) * d_head]
            k = qkv[:, (n_head + h) * d_head:(n_head + h + 1) * d_head]
            v = qkv[:, (2 * n_head + h) * d_head:(2 * n_head + h + 1) * d_head]
            s = _mm_nt(q, k) * scale                             # (T, T)
            s = jnp.where(key_pad, -1e9, s)
            s = s - jnp.max(s, axis=-1, keepdims=True)
            p = jnp.exp(s)
            # NB: approx reciprocal (EUP) -> ~1e-3 rel. diff vs an f32 torch ref.
            p = p * pl.reciprocal(jnp.sum(p, axis=-1, keepdims=True), approx=True)
            ctxs.append(_mm(p, v))                               # (T, dh)
        ctx = jnp.concatenate(ctxs, axis=-1) if n_head > 1 else ctxs[0]
        y = _mm(ctx, wo_ref[...]) + bo_ref[...] + x              # single out-proj
        y = _layer_norm(y, ln1g_ref[...], ln1b_ref[...])
        y = jnp.where(pad_q, 0.0, y)

        # ---- position-wise FFN: conv(k1)->relu->conv(k2) + residual + LN ------
        h1 = jnp.maximum(_conv_im2col(y, c1w_ref, c1b_ref, k1), 0.0)
        h2 = _conv_im2col(h1, c2w_ref, c2b_ref, k2)
        z = _layer_norm(h2 + y, ln2g_ref[...], ln2b_ref[...])
        z = jnp.where(pad_q, 0.0, z)
        o_ref[b] = z.astype(o_ref.dtype)


def _var_pred_kernel(lens_ref, x_ref, *refs, n_pred, k):
    """n_pred variance predictors sharing the same input x, fused into one call.

    Output is packed lane-dense as (b_blk, n_pred, T)."""
    o_ref = refs[-1]
    prm = refs[:-1]                              # n_pred * 10 parameter refs
    b_blk, T, _ = x_ref.shape
    base = pl.program_id(0) * b_blk
    key_col = jax.lax.broadcasted_iota(jnp.int32, (n_pred, T), 1)
    row_sel = jax.lax.broadcasted_iota(jnp.int32, (n_pred, T), 0)

    for b in range(b_blk):
        x = x_ref[b].astype(_F32)
        L = lens_ref[base + b]
        out = jnp.zeros((n_pred, T), _F32)
        for i in range(n_pred):
            (c1w, c1b, l1g, l1b, c2w, c2b, l2g, l2b, hw, hb) = prm[10 * i:10 * i + 10]
            h = jnp.maximum(_conv_im2col(x, c1w, c1b, k), 0.0)
            h = _layer_norm(h, l1g[...], l1b[...])
            h = jnp.maximum(_conv_im2col(h, c2w, c2b, k), 0.0)
            h = _layer_norm(h, l2g[...], l2b[...])
            row = _mm_nt(hw[...], h) + hb[...]                   # (1, T), time in lanes
            out = jnp.where(row_sel == i, row, out)
        out = jnp.where(key_col >= L, 0.0, out)
        o_ref[b] = out.astype(o_ref.dtype)


def _mel_postnet_kernel(x_ref, melw_ref, melb_ref, *rest, n_conv, k):
    """mel_linear + full PostNet (BN folded) + residual; mel and mel+postnet are
    written as one contiguous (T, 2*n_mel) slab per batch element."""
    conv_refs = rest[:2 * n_conv]
    o_ref = rest[2 * n_conv]
    b_blk = x_ref.shape[0]
    for b in range(b_blk):
        x = x_ref[b].astype(_F32)                                # (T, D)
        mel = _mm(x, melw_ref[...]) + melb_ref[...]              # (T, n_mel)
        h = mel
        for i in range(n_conv):
            h = _conv_im2col(h, conv_refs[2 * i], conv_refs[2 * i + 1], k)
            if i < n_conv - 1:
                h = jnp.tanh(h)
        o_ref[b] = jnp.concatenate([mel, h + mel], axis=-1).astype(o_ref.dtype)


# ----------------------------- kernel wrappers --------------------------------

_PARALLEL = pltpu.CompilerParams(dimension_semantics=("parallel",))


def _num_groups(B):
    g = CFG["batch_groups"]
    return g if (g > 0 and B % g == 0) else 1


def _wspec(a, *, prefetch):
    """Whole-array BlockSpec for tiny VMEM-resident weights/biases."""
    nd = a.ndim
    if prefetch:
        return pl.BlockSpec(a.shape, lambda g, s, _nd=nd: (0,) * _nd)
    return pl.BlockSpec(a.shape, lambda g, _nd=nd: (0,) * _nd)


def fft_block(p, x, lens):
    B, T, D = x.shape
    groups = _num_groups(B)
    bblk = B // groups
    H, dh = CFG["n_head"], CFG["d_k"]
    k1, k2 = CFG["kernel"]
    kern = functools.partial(_fft_block_kernel, n_head=H, d_head=dh, k1=k1, k2=k2,
                             scale=1.0 / float(np.sqrt(dh)))
    weights = (p["w_qkv"], p["b_qkv"], p["w_o"], p["b_o"], p["ln1_g"], p["ln1_b"],
               p["c1_w"], p["c1_b"], p["c2_w"], p["c2_b"], p["ln2_g"], p["ln2_b"])
    in_specs = [pl.BlockSpec((bblk, T, D), lambda g, s: (g, 0, 0))] + \
               [_wspec(a, prefetch=True) for a in weights]
    return pl.pallas_call(
        kern,
        out_shape=jax.ShapeDtypeStruct((B, T, D), _F32),
        grid_spec=pltpu.PrefetchScalarGridSpec(
            num_scalar_prefetch=1,
            grid=(groups,),
            in_specs=in_specs,
            out_specs=pl.BlockSpec((bblk, T, D), lambda g, s: (g, 0, 0))),
        compiler_params=_PARALLEL,
    )(lens, x, *weights)


def variance_predictors(preds, x, lens):
    """Run len(preds) variance predictors on the same x in ONE fused pallas_call.

    Returns (B, n_pred, T) f32 (lane-dense: time on the last axis)."""
    B, T, D = x.shape
    groups = _num_groups(B)
    bblk = B // groups
    n_pred = len(preds)
    k = CFG["var_kernel"]
    flat = []
    for q in preds:
        flat += [q["c1_w"], q["c1_b"], q["ln1_g"], q["ln1_b"],
                 q["c2_w"], q["c2_b"], q["ln2_g"], q["ln2_b"],
                 q["head_w"], q["head_b"]]
    in_specs = [pl.BlockSpec((bblk, T, D), lambda g, s: (g, 0, 0))] + \
               [_wspec(a, prefetch=True) for a in flat]
    return pl.pallas_call(
        functools.partial(_var_pred_kernel, n_pred=n_pred, k=k),
        out_shape=jax.ShapeDtypeStruct((B, n_pred, T), _F32),
        grid_spec=pltpu.PrefetchScalarGridSpec(
            num_scalar_prefetch=1,
            grid=(groups,),
            in_specs=in_specs,
            out_specs=pl.BlockSpec((bblk, n_pred, T), lambda g, s: (g, 0, 0))),
        compiler_params=_PARALLEL,
    )(lens, x, *flat)


def mel_and_postnet(mel_lin_p, post_p, x):
    B, T, D = x.shape
    groups = _num_groups(B)
    bblk = B // groups
    n_mel = CFG["n_mel"]
    convs = post_p["convs"]
    L = len(convs)
    k = CFG["postnet_k"]
    flat = []
    for c in convs:
        flat += [c["w"], c["b"]]
    args = (x, mel_lin_p["w"], mel_lin_p["b"], *flat)
    in_specs = [pl.BlockSpec((bblk, T, D), lambda g: (g, 0, 0))] + \
               [_wspec(a, prefetch=False) for a in args[1:]]
    packed = pl.pallas_call(
        functools.partial(_mel_postnet_kernel, n_conv=L, k=k),
        out_shape=jax.ShapeDtypeStruct((B, T, 2 * n_mel), _F32),
        grid=(groups,),
        in_specs=in_specs,
        out_specs=pl.BlockSpec((bblk, T, 2 * n_mel), lambda g: (g, 0, 0)),
        compiler_params=_PARALLEL,
    )(*args)
    return packed[..., :n_mel], packed[..., n_mel:]


def age_projection(p, age_e):
    """Tiny 2-layer MLP: plain JAX (a pallas_call launch would cost more)."""
    h = jnp.maximum(age_e @ p["l1_w"] + p["l1_b"], 0.0)
    return h @ p["l2_w"] + p["l2_b"]


# ----------------------------- parameter init --------------------------------


def _init_linear(key, din, dout):
    kw, kb = jax.random.split(key)
    return (0.05 * jax.random.normal(kw, (din, dout), _F32),
            0.01 * jax.random.normal(kb, (dout,), _F32))


def _init_conv(key, k, cin, cout):
    kw, kb = jax.random.split(key)
    return (0.05 * jax.random.normal(kw, (k, cin, cout), _F32),
            0.01 * jax.random.normal(kb, (cout,), _F32))


def sinusoid_table(n_pos, d):
    pos = np.arange(n_pos)[:, None].astype(np.float64)
    i = np.arange(d)[None, :]
    angle = pos / np.power(10000.0, 2 * (i // 2) / d)
    table = np.zeros((n_pos, d), dtype=np.float32)
    table[:, 0::2] = np.sin(angle[:, 0::2])
    table[:, 1::2] = np.cos(angle[:, 1::2])
    return jnp.asarray(table)


def init_fft_layer(key):
    d, h, dk, dv, di = CFG["d_model"], CFG["n_head"], CFG["d_k"], CFG["d_v"], CFG["d_inner"]
    assert dk == dv
    k1, k2 = CFG["kernel"]
    ks = jax.random.split(key, 6)
    wq, bq = _init_linear(ks[0], d, h * dk)
    wk, bk = _init_linear(ks[1], d, h * dk)
    wv, bv = _init_linear(ks[2], d, h * dv)
    wfc, bfc = _init_linear(ks[3], h * dv, d)
    c1w, c1b = _init_conv(ks[4], k1, d, di)
    c2w, c2b = _init_conv(ks[5], k2, di, d)
    return {
        # fused QKV weight: columns [Q heads | K heads | V heads], each head-major
        "w_qkv": jnp.concatenate([wq, wk, wv], axis=1).astype(_BF16),    # (D, 3*H*dh)
        "b_qkv": jnp.concatenate([bq, bk, bv], axis=0)[None, :],         # (1, 3*H*dh)
        "w_o": wfc.astype(_BF16),                                        # (H*dv, D)
        "b_o": bfc[None, :],
        "ln1_g": jnp.ones((1, d), _F32), "ln1_b": jnp.zeros((1, d), _F32),
        # conv weights pre-reshaped tap-major for the single im2col matmul
        "c1_w": c1w.reshape(k1 * d, di).astype(_BF16), "c1_b": c1b[None, :],
        "c2_w": c2w.reshape(k2 * di, d).astype(_BF16), "c2_b": c2b[None, :],
        "ln2_g": jnp.ones((1, d), _F32), "ln2_b": jnp.zeros((1, d), _F32),
    }


def init_var_predictor(key):
    d, f, k = CFG["d_model"], CFG["var_filter"], CFG["var_kernel"]
    ks = jax.random.split(key, 3)
    c1w, c1b = _init_conv(ks[0], k, d, f)
    c2w, c2b = _init_conv(ks[1], k, f, f)
    lw, lb = _init_linear(ks[2], f, 1)
    return {
        "c1_w": c1w.reshape(k * d, f).astype(_BF16), "c1_b": c1b[None, :],
        "ln1_g": jnp.ones((1, f), _F32), "ln1_b": jnp.zeros((1, f), _F32),
        "c2_w": c2w.reshape(k * f, f).astype(_BF16), "c2_b": c2b[None, :],
        "ln2_g": jnp.ones((1, f), _F32), "ln2_b": jnp.zeros((1, f), _F32),
        "head_w": lw.T.astype(_BF16),                 # (1, F)  -> row so the head
        "head_b": lb.reshape(1, 1),                   #            emits (1, T)
    }


def init_postnet(key):
    n_mel, pd, K, L = CFG["n_mel"], CFG["postnet_dim"], CFG["postnet_k"], CFG["postnet_layers"]
    dims = [n_mel] + [pd] * (L - 1) + [n_mel]
    convs = []
    ks = jax.random.split(key, L)
    for i in range(L):
        cin, cout = dims[i], dims[i + 1]
        sub = jax.random.split(ks[i], 5)
        w, b = _init_conv(sub[0], K, cin, cout)
        # eval-mode BatchNorm1d folded into the conv weights
        gamma = 1.0 + 0.1 * jax.random.normal(sub[1], (cout,), _F32)
        beta = 0.1 * jax.random.normal(sub[2], (cout,), _F32)
        rmean = 0.1 * jax.random.normal(sub[3], (cout,), _F32)
        rvar = jnp.abs(1.0 + 0.1 * jax.random.normal(sub[4], (cout,), _F32))
        scale = gamma / jnp.sqrt(rvar + 1e-5)
        convs.append({"w": (w * scale[None, None, :]).reshape(K * cin, cout).astype(_BF16),
                      "b": ((b - rmean) * scale + beta)[None, :]})
    return {"convs": convs}


def init_params(key):
    d = CFG["d_model"]
    ks = jax.random.split(key, 16)
    word_emb = 0.05 * jax.random.normal(ks[0], (CFG["vocab"], d), _F32)
    word_emb = word_emb.at[0].set(0.0)  # padding_idx = 0
    pos = sinusoid_table(CFG["max_seq_len"], d)
    mel_w, mel_b = _init_linear(ks[8], d, CFG["n_mel"])
    aw1, ab1 = _init_linear(ks[12], CFG["age_hidden"], d)
    aw2, ab2 = _init_linear(ks[13], d, d)
    return {
        "encoder": {"word_emb": word_emb, "pos": pos,
                    "layers": [init_fft_layer(k)
                               for k in jax.random.split(ks[1], CFG["enc_layers"])]},
        "decoder": {"pos": pos,
                    "layers": [init_fft_layer(k)
                               for k in jax.random.split(ks[2], CFG["dec_layers"])]},
        "va": {"dur": init_var_predictor(ks[3]),
               "pitch": init_var_predictor(ks[4]),
               "energy": init_var_predictor(ks[5]),
               "pitch_bins": jnp.linspace(-1.0, 1.0, CFG["n_bins"] - 1),
               "energy_bins": jnp.linspace(-1.0, 1.0, CFG["n_bins"] - 1),
               "pitch_emb": 0.05 * jax.random.normal(ks[6], (CFG["n_bins"], d), _F32),
               "energy_emb": 0.05 * jax.random.normal(ks[7], (CFG["n_bins"], d), _F32)},
        "mel_linear": {"w": mel_w.astype(_BF16), "b": mel_b[None, :]},
        "postnet": init_postnet(ks[9]),
        "speaker_emb": 0.05 * jax.random.normal(ks[10], (CFG["n_speakers"], d), _F32),
        "age_emb": 0.05 * jax.random.normal(ks[11], (CFG["n_ages"], CFG["age_hidden"]), _F32),
        "age_proj": {"l1_w": aw1, "l1_b": ab1, "l2_w": aw2, "l2_b": ab2},
    }


# ----------------------------- model pieces ----------------------------------


def get_mask_from_lengths(lengths, max_len):
    ids = jnp.arange(max_len)
    return ids[None, :] >= lengths[:, None]  # True = padded


def encoder_forward(p, texts, src_lens):
    B, T = texts.shape
    x = p["word_emb"][texts] + p["pos"][None, :T, :]
    for lp in p["layers"]:
        x = fft_block(lp, x, src_lens)
    return x


def decoder_forward(p, x, dec_lens):
    B, T, _ = x.shape
    x = x + p["pos"][None, :T, :]
    for lp in p["layers"]:
        x = fft_block(lp, x, dec_lens)
    return x


def length_regulator(x, durations, max_len):
    B, T, D = x.shape
    cum = jnp.cumsum(durations, axis=1)          # (B, T)
    mel_len = cum[:, -1]
    frames = jnp.arange(max_len)
    idx = jnp.sum(frames[None, :, None] >= cum[:, None, :], axis=-1)  # (B, max_len)
    idx = jnp.clip(idx, 0, T - 1)
    out = jnp.take_along_axis(x, idx[..., None], axis=1)
    out = jnp.where(frames[None, :, None] < mel_len[:, None, None], out, 0.0)
    return out, mel_len


def variance_adaptor(p, x, src_lens, mel_masks, mel_lens_in, max_mel_len,
                     p_targets, e_targets, d_targets,
                     p_control, e_control, d_control):
    # duration + pitch predictors read the same x -> ONE fused kernel, (B, 2, T)
    dp = variance_predictors([p["dur"], p["pitch"]], x, src_lens)
    log_d_pred, p_pred = dp[:, 0, :], dp[:, 1, :]
    if p_targets is not None:
        p_idx = jnp.searchsorted(p["pitch_bins"], p_targets, side="left")
    else:
        p_pred = p_pred * p_control
        p_idx = jnp.searchsorted(p["pitch_bins"], p_pred, side="left")
    x = x + p["pitch_emb"][p_idx]

    # energy predictor reads x AFTER the pitch-embedding add -> separate call
    e_pred = variance_predictors([p["energy"]], x, src_lens)[:, 0, :]
    if e_targets is not None:
        e_idx = jnp.searchsorted(p["energy_bins"], e_targets, side="left")
    else:
        e_pred = e_pred * e_control
        e_idx = jnp.searchsorted(p["energy_bins"], e_pred, side="left")
    x = x + p["energy_emb"][e_idx]

    if d_targets is not None:
        x, mel_len = length_regulator(x, d_targets, max_mel_len)
        d_rounded = d_targets
        dec_lens = mel_lens_in if mel_lens_in is not None else mel_len
        if mel_masks is None:
            mel_masks = get_mask_from_lengths(dec_lens, max_mel_len)
    else:
        d_rounded = jnp.clip(
            jnp.round((jnp.exp(log_d_pred) - 1.0) * d_control), 0, None).astype(jnp.int32)
        x, mel_len = length_regulator(x, d_rounded, max_mel_len)
        dec_lens = mel_len
        mel_masks = get_mask_from_lengths(mel_len, max_mel_len)
    return x, p_pred, e_pred, log_d_pred, d_rounded, mel_len, mel_masks, dec_lens


# ----------------------------- full forward ----------------------------------


def aging_fastspeech2_forward(params, speakers, ages, texts, src_lens, max_src_len,
                              mels=None, mel_lens=None, max_mel_len=None,
                              p_targets=None, e_targets=None, d_targets=None,
                              p_control=1.0, e_control=1.0, d_control=1.0):
    src_masks = get_mask_from_lengths(src_lens, max_src_len)
    mel_masks = (get_mask_from_lengths(mel_lens, max_mel_len)
                 if mel_lens is not None else None)

    output = encoder_forward(params["encoder"], texts, src_lens)

    # age conditioning: age_proj(age_emb(ages)) broadcast over time (plain JAX)
    age_h = age_projection(params["age_proj"], params["age_emb"][ages])
    # speaker conditioning (frozen pretrained resemblyzer embedding in the original)
    output = output + (age_h + params["speaker_emb"][speakers])[:, None, :]

    (output, p_pred, e_pred, log_d_pred, d_rounded,
     mel_len, mel_masks, dec_lens) = variance_adaptor(
        params["va"], output, src_lens, mel_masks, mel_lens, max_mel_len,
        p_targets, e_targets, d_targets, p_control, e_control, d_control)

    output = decoder_forward(params["decoder"], output, dec_lens)

    mel, postnet_output = mel_and_postnet(params["mel_linear"], params["postnet"], output)

    return (mel, postnet_output, p_pred, e_pred, log_d_pred, d_rounded,
            src_masks, mel_masks, src_lens, mel_len)


# ----------------------------------- main -------------------------------------

if __name__ == "__main__":
    key = jax.random.PRNGKey(0)
    params = init_params(key)

    B, T = 2, 8
    max_mel_len = 16
    ks = jax.random.split(jax.random.PRNGKey(0), 8)

    src_lens = jnp.array([8, 6], dtype=jnp.int32)
    texts = jax.random.randint(ks[1], (B, T), 1, CFG["vocab"]).astype(jnp.int32)
    texts = texts * (jnp.arange(T)[None, :] < src_lens[:, None])   # pad with 0
    speakers = jnp.array([0, 1], dtype=jnp.int32)
    ages = jnp.array([1, 2], dtype=jnp.int32)

    d_targets = jnp.where(jnp.arange(T)[None, :] < src_lens[:, None], 2, 0).astype(jnp.int32)
    mel_lens = jnp.sum(d_targets, axis=1).astype(jnp.int32)        # [16, 12]
    p_targets = 0.5 * jax.random.normal(ks[2], (B, T), jnp.float32)
    e_targets = 0.5 * jax.random.normal(ks[3], (B, T), jnp.float32)

    outputs = aging_fastspeech2_forward(
        params, speakers, ages, texts, src_lens, T,
        mels=None, mel_lens=mel_lens, max_mel_len=max_mel_len,
        p_targets=p_targets, e_targets=e_targets, d_targets=d_targets,
        p_control=1.0, e_control=1.0, d_control=1.0)

    outputs = jax.block_until_ready(outputs)
    mel_out, post_out = outputs[0], outputs[1]
    assert mel_out.shape == (B, max_mel_len, CFG["n_mel"])
    assert post_out.shape == (B, max_mel_len, CFG["n_mel"])
    assert bool(jnp.all(jnp.isfinite(mel_out))) and bool(jnp.all(jnp.isfinite(post_out)))
    assert outputs[2].shape == (B, T) and outputs[4].shape == (B, T)
    print("KERNEL_OK")
</pallas_src>

<mosaic_0001>
module attributes {stable_mosaic.version = 11 : i64} {
  func.func @_fft_block_kernel(%arg0: i32, %arg1: memref<2xi32, #tpu.memory_space<smem>>, %arg2: memref<2x8x32xf32, #tpu.memory_space<vmem>>, %arg3: memref<32x96xbf16, #tpu.memory_space<vmem>>, %arg4: memref<1x96xf32, #tpu.memory_space<vmem>>, %arg5: memref<32x32xbf16, #tpu.memory_space<vmem>>, %arg6: memref<1x32xf32, #tpu.memory_space<vmem>>, %arg7: memref<1x32xf32, #tpu.memory_space<vmem>>, %arg8: memref<1x32xf32, #tpu.memory_space<vmem>>, %arg9: memref<288x64xbf16, #tpu.memory_space<vmem>>, %arg10: memref<1x64xf32, #tpu.memory_space<vmem>>, %arg11: memref<64x32xbf16, #tpu.memory_space<vmem>>, %arg12: memref<1x32xf32, #tpu.memory_space<vmem>>, %arg13: memref<1x32xf32, #tpu.memory_space<vmem>>, %arg14: memref<1x32xf32, #tpu.memory_space<vmem>>, %arg15: memref<2x8x32xf32, #tpu.memory_space<vmem>>) attributes {dimension_semantics = [#tpu.dimension_semantics<parallel>], iteration_bounds = array<i64: 1>, scalar_prefetch = 1 : i64, scratch_operands = 0 : i64, tpu.core_type = #tpu.core_type<tc>, window_params = [{transform_indices = @transform_0, window_bounds = array<i64: 2, 8, 32>}, {pipeline_mode = #tpu.pipeline_mode<synchronous>, transform_indices = @transform_1, window_bounds = array<i64: 32, 96>}, {pipeline_mode = #tpu.pipeline_mode<synchronous>, transform_indices = @transform_2, window_bounds = array<i64: 1, 96>}, {pipeline_mode = #tpu.pipeline_mode<synchronous>, transform_indices = @transform_3, window_bounds = array<i64: 32, 32>}, {pipeline_mode = #tpu.pipeline_mode<synchronous>, transform_indices = @transform_4, window_bounds = array<i64: 1, 32>}, {pipeline_mode = #tpu.pipeline_mode<synchronous>, transform_indices = @transform_5, window_bounds = array<i64: 1, 32>}, {pipeline_mode = #tpu.pipeline_mode<synchronous>, transform_indices = @transform_6, window_bounds = array<i64: 1, 32>}, {pipeline_mode = #tpu.pipeline_mode<synchronous>, transform_indices = @transform_7, window_bounds = array<i64: 288, 64>}, {pipeline_mode = #tpu.pipeline_mode<synchronous>, transform_indices = @transform_8, window_bounds = array<i64: 1, 64>}, {pipeline_mode = #tpu.pipeline_mode<synchronous>, transform_indices = @transform_9, window_bounds = array<i64: 64, 32>}, {pipeline_mode = #tpu.pipeline_mode<synchronous>, transform_indices = @transform_10, window_bounds = array<i64: 1, 32>}, {pipeline_mode = #tpu.pipeline_mode<synchronous>, transform_indices = @transform_11, window_bounds = array<i64: 1, 32>}, {pipeline_mode = #tpu.pipeline_mode<synchronous>, transform_indices = @transform_12, window_bounds = array<i64: 1, 32>}, {transform_indices = @transform_13, window_bounds = array<i64: 2, 8, 32>}]} {
    %c2_i32 = arith.constant 2 : i32
    %0 = arith.muli %arg0, %c2_i32 : i32
    %1 = tpu.iota {dimensions = array<i32: 0>} : vector<8x1xi32>
    %2 = tpu.iota {dimensions = array<i32: 1>} : vector<8x8xi32>
    %c0 = arith.constant 0 : index
    %c0_0 = arith.constant 0 : index
    %c0_1 = arith.constant 0 : index
    %3 = vector.load %arg2[%c0, %c0_0, %c0_1] : memref<2x8x32xf32, #tpu.memory_space<vmem>>, vector<1x8x32xf32>
    %4 = vector.shape_cast %3 : vector<1x8x32xf32> to vector<8x32xf32>
    %c0_i32 = arith.constant 0 : i32
    %5 = arith.addi %0, %c0_i32 : i32
    %6 = arith.index_cast %5 : i32 to index
    %7 = memref.load %arg1[%6] : memref<2xi32, #tpu.memory_space<smem>>
    %8 = vector.broadcast %7 : i32 to vector<8x1xi32>
    %9 = arith.cmpi sge, %1, %8 : vector<8x1xi32>
    %10 = vector.broadcast %7 : i32 to vector<8x8xi32>
    %11 = arith.cmpi sge, %2, %10 : vector<8x8xi32>
    %c0_2 = arith.constant 0 : index
    %c0_3 = arith.constant 0 : index
    %12 = vector.load %arg3[%c0_2, %c0_3] : memref<32x96xbf16, #tpu.memory_space<vmem>>, vector<32x96xbf16>
    %13 = arith.truncf %4 : vector<8x32xf32> to vector<8x32xbf16>
    %cst = arith.constant dense<0.000000e+00> : vector<8x96xf32>
    %14 = tpu.matmul %13, %12, %cst {dimension_numbers = #tpu.dot_dimension_numbers<[1], [0], [0], [1], [0, 0, 1, 1], [], []>} : vector<8x32xbf16>, vector<32x96xbf16>, vector<8x96xf32> -> vector<8x96xf32>
    %c0_4 = arith.constant 0 : index
    %c0_5 = arith.constant 0 : index
    %15 = vector.load %arg4[%c0_4, %c0_5] : memref<1x96xf32, #tpu.memory_space<vmem>>, vector<1x96xf32>
    %16 = vector.broadcast %15 : vector<1x96xf32> to vector<8x96xf32>
    %17 = arith.addf %14, %16 : vector<8x96xf32>
    %18 = vector.extract_strided_slice %17 {offsets = [0, 0], sizes = [8, 16], strides = [1, 1]} : vector<8x96xf32> to vector<8x16xf32>
    %19 = vector.extract_strided_slice %17 {offsets = [0, 32], sizes = [8, 16], strides = [1, 1]} : vector<8x96xf32> to vector<8x16xf32>
    %20 = vector.extract_strided_slice %17 {offsets = [0, 64], sizes = [8, 16], strides = [1, 1]} : vector<8x96xf32> to vector<8x16xf32>
    %21 = arith.truncf %18 : vector<8x16xf32> to vector<8x16xbf16>
    %22 = arith.truncf %19 : vector<8x16xf32> to vector<8x16xbf16>
    %cst_6 = arith.constant dense<0.000000e+00> : vector<8x8xf32>
    %23 = tpu.matmul %21, %22, %cst_6 {dimension_numbers = #tpu.dot_dimension_numbers<[1], [1], [0], [0], [0, 0, 1, 0], [], []>} : vector<8x16xbf16>, vector<8x16xbf16>, vector<8x8xf32> -> vector<8x8xf32>
    %cst_7 = arith.constant 2.500000e-01 : f32
    %24 = vector.broadcast %cst_7 : f32 to vector<8x8xf32>
    %25 = arith.mulf %23, %24 : vector<8x8xf32>
    %cst_8 = arith.constant -1.000000e+09 : f32
    %26 = vector.broadcast %cst_8 : f32 to vector<8x8xf32>
    %27 = arith.select %11, %26, %25 : vector<8x8xi1>, vector<8x8xf32>
    %cst_9 = arith.constant dense<0xFF800000> : vector<8xf32>
    %28 = vector.multi_reduction <maximumf>, %27, %cst_9 [1] : vector<8x8xf32> to vector<8xf32>
    %29 = vector.shape_cast %28 : vector<8xf32> to vector<8x1xf32>
    %30 = vector.broadcast %29 : vector<8x1xf32> to vector<8x8xf32>
    %31 = arith.subf %27, %30 : vector<8x8xf32>
    %32 = math.exp %31 : vector<8x8xf32>
    %cst_10 = arith.constant dense<0.000000e+00> : vector<8xf32>
    %33 = vector.multi_reduction <add>, %32, %cst_10 [1] : vector<8x8xf32> to vector<8xf32>
    %34 = vector.shape_cast %33 : vector<8xf32> to vector<8x1xf32>
    %35 = tpu.reciprocal %34 {approx = true} : vector<8x1xf32> -> vector<8x1xf32>
    %36 = vector.broadcast %35 : vector<8x1xf32> to vector<8x8xf32>
    %37 = arith.mulf %32, %36 : vector<8x8xf32>
    %38 = arith.truncf %37 : vector<8x8xf32> to vector<8x8xbf16>
    %39 = arith.truncf %20 : vector<8x16xf32> to vector<8x16xbf16>
    %cst_11 = arith.constant dense<0.000000e+00> : vector<8x16xf32>
    %40 = tpu.matmul %38, %39, %cst_11 {dimension_numbers = #tpu.dot_dimension_numbers<[1], [0], [0], [1], [0, 0, 1, 1], [], []>} : vector<8x8xbf16>, vector<8x16xbf16>, vector<8x16xf32> -> vector<8x16xf32>
    %41 = vector.extract_strided_slice %17 {offsets = [0, 16], sizes = [8, 16], strides = [1, 1]} : vector<8x96xf32> to vector<8x16xf32>
    %42 = vector.extract_strided_slice %17 {offsets = [0, 48], sizes = [8, 16], strides = [1, 1]} : vector<8x96xf32> to vector<8x16xf32>
    %43 = vector.extract_strided_slice %17 {offsets = [0, 80], sizes = [8, 16], strides = [1, 1]} : vector<8x96xf32> to vector<8x16xf32>
    %44 = arith.truncf %41 : vector<8x16xf32> to vector<8x16xbf16>
    %45 = arith.truncf %42 : vector<8x16xf32> to vector<8x16xbf16>
    %cst_12 = arith.constant dense<0.000000e+00> : vector<8x8xf32>
    %46 = tpu.matmul %44, %45, %cst_12 {dimension_numbers = #tpu.dot_dimension_numbers<[1], [1], [0], [0], [0, 0, 1, 0], [], []>} : vector<8x16xbf16>, vector<8x16xbf16>, vector<8x8xf32> -> vector<8x8xf32>
    %cst_13 = arith.constant 2.500000e-01 : f32
    %47 = vector.broadcast %cst_13 : f32 to vector<8x8xf32>
    %48 = arith.mulf %46, %47 : vector<8x8xf32>
    %cst_14 = arith.constant -1.000000e+09 : f32
    %49 = vector.broadcast %cst_14 : f32 to vector<8x8xf32>
    %50 = arith.select %11, %49, %48 : vector<8x8xi1>, vector<8x8xf32>
    %cst_15 = arith.constant dense<0xFF800000> : vector<8xf32>
    %51 = vector.multi_reduction <maximumf>, %50, %cst_15 [1] : vector<8x8xf32> to vector<8xf32>
    %52 = vector.shape_cast %51 : vector<8xf32> to vector<8x1xf32>
    %53 = vector.broadcast %52 : vector<8x1xf32> to vector<8x8xf32>
    %54 = arith.subf %50, %53 : vector<8x8xf32>
    %55 = math.exp %54 : vector<8x8xf32>
    %cst_16 = arith.constant dense<0.000000e+00> : vector<8xf32>
    %56 = vector.multi_reduction <add>, %55, %cst_16 [1] : vector<8x8xf32> to vector<8xf32>
    %57 = vector.shape_cast %56 : vector<8xf32> to vector<8x1xf32>
    %58 = tpu.reciprocal %57 {approx = true} : vector<8x1xf32> -> vector<8x1xf32>
    %59 = vector.broadcast %58 : vector<8x1xf32> to vector<8x8xf32>
    %60 = arith.mulf %55, %59 : vector<8x8xf32>
    %61 = arith.truncf %60 : vector<8x8xf32> to vector<8x8xbf16>
    %62 = arith.truncf %43 : vector<8x16xf32> to vector<8x16xbf16>
    %cst_17 = arith.constant dense<0.000000e+00> : vector<8x16xf32>
    %63 = tpu.matmul %61, %62, %cst_17 {dimension_numbers = #tpu.dot_dimension_numbers<[1], [0], [0], [1], [0, 0, 1, 1], [], []>} : vector<8x8xbf16>, vector<8x16xbf16>, vector<8x16xf32> -> vector<8x16xf32>
    %64 = tpu.concatenate %40, %63 in 1 : vector<8x16xf32>, vector<8x16xf32> -> vector<8x32xf32>
    %c0_18 = arith.constant 0 : index
    %c0_19 = arith.constant 0 : index
    %65 = vector.load %arg5[%c0_18, %c0_19] : memref<32x32xbf16, #tpu.memory_space<vmem>>, vector<32x32xbf16>
    %66 = arith.truncf %64 : vector<8x32xf32> to vector<8x32xbf16>
    %cst_20 = arith.constant dense<0.000000e+00> : vector<8x32xf32>
    %67 = tpu.matmul %66, %65, %cst_20 {dimension_numbers = #tpu.dot_dimension_numbers<[1], [0], [0], [1], [0, 0, 1, 1], [], []>} : vector<8x32xbf16>, vector<32x32xbf16>, vector<8x32xf32> -> vector<8x32xf32>
    %c0_21 = arith.constant 0 : index
    %c0_22 = arith.constant 0 : index
    %68 = vector.load %arg6[%c0_21, %c0_22] : memref<1x32xf32, #tpu.memory_space<vmem>>, vector<1x32xf32>
    %69 = vector.broadcast %68 : vector<1x32xf32> to vector<8x32xf32>
    %70 = arith.addf %67, %69 : vector<8x32xf32>
    %71 = arith.addf %70, %4 : vector<8x32xf32>
    %c0_23 = arith.constant 0 : index
    %c0_24 = arith.constant 0 : index
    %72 = vector.load %arg7[%c0_23, %c0_24] : memref<1x32xf32, #tpu.memory_space<vmem>>, vector<1x32xf32>
    %c0_25 = arith.constant 0 : index
    %c0_26 = arith.constant 0 : index
    %73 = vector.load %arg8[%c0_25, %c0_26] : memref<1x32xf32, #tpu.memory_space<vmem>>, vector<1x32xf32>
    %cst_27 = arith.constant dense<0.000000e+00> : vector<8xf32>
    %74 = vector.multi_reduction <add>, %71, %cst_27 [1] : vector<8x32xf32> to vector<8xf32>
    %75 = vector.shape_cast %74 : vector<8xf32> to vector<8x1xf32>
    %cst_28 = arith.constant 3.200000e+01 : f32
    %76 = vector.broadcast %cst_28 : f32 to vector<8x1xf32>
    %77 = arith.divf %75, %76 : vector<8x1xf32>
    %78 = vector.broadcast %77 : vector<8x1xf32> to vector<8x32xf32>
    %79 = arith.subf %71, %78 : vector<8x32xf32>
    %80 = arith.mulf %79, %79 : vector<8x32xf32>
    %cst_29 = arith.constant dense<0.000000e+00> : vector<8xf32>
    %81 = vector.multi_reduction <add>, %80, %cst_29 [1] : vector<8x32xf32> to vector<8xf32>
    %82 = vector.shape_cast %81 : vector<8xf32> to vector<8x1xf32>
    %cst_30 = arith.constant 3.200000e+01 : f32
    %83 = vector.broadcast %cst_30 : f32 to vector<8x1xf32>
    %84 = arith.divf %82, %83 : vector<8x1xf32>
    %85 = vector.broadcast %77 : vector<8x1xf32> to vector<8x32xf32>
    %86 = arith.subf %71, %85 : vector<8x32xf32>
    %cst_31 = arith.constant 9.99999974E-6 : f32
    %87 = vector.broadcast %cst_31 : f32 to vector<8x1xf32>
    %88 = arith.addf %84, %87 : vector<8x1xf32>
    %89 = math.rsqrt %88 : vector<8x1xf32>
    %90 = vector.broadcast %89 : vector<8x1xf32> to vector<8x32xf32>
    %91 = arith.mulf %86, %90 : vector<8x32xf32>
    %92 = vector.broadcast %72 : vector<1x32xf32> to vector<8x32xf32>
    %93 = arith.mulf %91, %92 : vector<8x32xf32>
    %94 = vector.broadcast %73 : vector<1x32xf32> to vector<8x32xf32>
    %95 = arith.addf %93, %94 : vector<8x32xf32>
    %cst_32 = arith.constant 0.000000e+00 : f32
    %96 = vector.shape_cast %9 : vector<8x1xi1> to vector<8x1xi1>
    %97 = vector.broadcast %96 : vector<8x1xi1> to vector<8x32xi1>
    %98 = vector.broadcast %cst_32 : f32 to vector<8x32xf32>
    %99 = arith.select %97, %98, %95 : vector<8x32xi1>, vector<8x32xf32>
    %cst_33 = arith.constant 0.000000e+00 : f32
    %100 = vector.broadcast %cst_33 : f32 to vector<8x32xf32>
    %101 = tpu.concatenate %100, %99, %100 in 0 : vector<8x32xf32>, vector<8x32xf32>, vector<8x32xf32> -> vector<24x32xf32>
    %102 = vector.extract_strided_slice %101 {offsets = [4, 0], sizes = [8, 32], strides = [1, 1]} : vector<24x32xf32> to vector<8x32xf32>
    %103 = vector.extract_strided_slice %101 {offsets = [5, 0], sizes = [8, 32], strides = [1, 1]} : vector<24x32xf32> to vector<8x32xf32>
    %104 = vector.extract_strided_slice %101 {offsets = [6, 0], sizes = [8, 32], strides = [1, 1]} : vector<24x32xf32> to vector<8x32xf32>
    %105 = vector.extract_strided_slice %101 {offsets = [7, 0], sizes = [8, 32], strides = [1, 1]} : vector<24x32xf32> to vector<8x32xf32>
    %106 = vector.extract_strided_slice %101 {offsets = [8, 0], sizes = [8, 32], strides = [1, 1]} : vector<24x32xf32> to vector<8x32xf32>
    %107 = vector.extract_strided_slice %101 {offsets = [9, 0], sizes = [8, 32], strides = [1, 1]} : vector<24x32xf32> to vector<8x32xf32>
    %108 = vector.extract_strided_slice %101 {offsets = [10, 0], sizes = [8, 32], strides = [1, 1]} : vector<24x32xf32> to vector<8x32xf32>
    %109 = vector.extract_strided_slice %101 {offsets = [11, 0], sizes = [8, 32], strides = [1, 1]} : vector<24x32xf32> to vector<8x32xf32>
    %110 = vector.extract_strided_slice %101 {offsets = [12, 0], sizes = [8, 32], strides = [1, 1]} : vector<24x32xf32> to vector<8x32xf32>
    %111 = tpu.concatenate %102, %103, %104, %105, %106, %107, %108, %109, %110 in 1 : vector<8x32xf32>, vector<8x32xf32>, vector<8x32xf32>, vector<8x32xf32>, vector<8x32xf32>, vector<8x32xf32>, vector<8x32xf32>, vector<8x32xf32>, vector<8x32xf32> -> vector<8x288xf32>
    %c0_34 = arith.constant 0 : index
    %c0_35 = arith.constant 0 : index
    %112 = vector.load %arg9[%c0_34, %c0_35] : memref<288x64xbf16, #tpu.memory_space<vmem>>, vector<288x64xbf16>
    %113 = arith.truncf %111 : vector<8x288xf32> to vector<8x288xbf16>
    %cst_36 = arith.constant dense<0.000000e+00> : vector<8x64xf32>
    %114 = tpu.matmul %113, %112, %cst_36 {dimension_numbers = #tpu.dot_dimension_numbers<[1], [0], [0], [1], [0, 0, 1, 1], [], []>} : vector<8x288xbf16>, vector<288x64xbf16>, vector<8x64xf32> -> vector<8x64xf32>
    %c0_37 = arith.constant 0 : index
    %c0_38 = arith.constant 0 : index
    %115 = vector.load %arg10[%c0_37, %c0_38] : memref<1x64xf32, #tpu.memory_space<vmem>>, vector<1x64xf32>
    %116 = vector.broadcast %115 : vector<1x64xf32> to vector<8x64xf32>
    %117 = arith.addf %114, %116 : vector<8x64xf32>
    %cst_39 = arith.constant 0.000000e+00 : f32
    %118 = vector.broadcast %cst_39 : f32 to vector<8x64xf32>
    %119 = arith.maximumf %117, %118 : vector<8x64xf32>
    %c0_40 = arith.constant 0 : index
    %c0_41 = arith.constant 0 : index
    %120 = vector.load %arg11[%c0_40, %c0_41] : memref<64x32xbf16, #tpu.memory_space<vmem>>, vector<64x32xbf16>
    %121 = arith.truncf %119 : vector<8x64xf32> to vector<8x64xbf16>
    %cst_42 = arith.constant dense<0.000000e+00> : vector<8x32xf32>
    %122 = tpu.matmul %121, %120, %cst_42 {dimension_numbers = #tpu.dot_dimension_numbers<[1], [0], [0], [1], [0, 0, 1, 1], [], []>} : vector<8x64xbf16>, vector<64x32xbf16>, vector<8x32xf32> -> vector<8x32xf32>
    %c0_43 = arith.constant 0 : index
    %c0_44 = arith.constant 0 : index
    %123 = vector.load %arg12[%c0_43, %c0_44] : memref<1x32xf32, #tpu.memory_space<vmem>>, vector<1x32xf32>
    %124 = vector.broadcast %123 : vector<1x32xf32> to vector<8x32xf32>
    %125 = arith.addf %122, %124 : vector<8x32xf32>
    %126 = arith.addf %125, %99 : vector<8x32xf32>
    %c0_45 = arith.constant 0 : index
    %c0_46 = arith.constant 0 : index
    %127 = vector.load %arg13[%c0_45, %c0_46] : memref<1x32xf32, #tpu.memory_space<vmem>>, vector<1x32xf32>
    %c0_47 = arith.constant 0 : index
    %c0_48 = arith.constant 0 : index
    %128 = vector.load %arg14[%c0_47, %c0_48] : memref<1x32xf32, #tpu.memory_space<vmem>>, vector<1x32xf32>
    %cst_49 = arith.constant dense<0.000000e+00> : vector<8xf32>
    %129 = vector.multi_reduction <add>, %126, %cst_49 [1] : vector<8x32xf32> to vector<8xf32>
    %130 = vector.shape_cast %129 : vector<8xf32> to vector<8x1xf32>
    %cst_50 = arith.constant 3.200000e+01 : f32
    %131 = vector.broadcast %cst_50 : f32 to vector<8x1xf32>
    %132 = arith.divf %130, %131 : vector<8x1xf32>
    %133 = vector.broadcast %132 : vector<8x1xf32> to vector<8x32xf32>
    %134 = arith.subf %126, %133 : vector<8x32xf32>
    %135 = arith.mulf %134, %134 : vector<8x32xf32>
    %cst_51 = arith.constant dense<0.000000e+00> : vector<8xf32>
    %136 = vector.multi_reduction <add>, %135, %cst_51 [1] : vector<8x32xf32> to vector<8xf32>
    %137 = vector.shape_cast %136 : vector<8xf32> to vector<8x1xf32>
    %cst_52 = arith.constant 3.200000e+01 : f32
    %138 = vector.broadcast %cst_52 : f32 to vector<8x1xf32>
    %139 = arith.divf %137, %138 : vector<8x1xf32>
    %140 = vector.broadcast %132 : vector<8x1xf32> to vector<8x32xf32>
    %141 = arith.subf %126, %140 : vector<8x32xf32>
    %cst_53 = arith.constant 9.99999974E-6 : f32
    %142 = vector.broadcast %cst_53 : f32 to vector<8x1xf32>
    %143 = arith.addf %139, %142 : vector<8x1xf32>
    %144 = math.rsqrt %143 : vector<8x1xf32>
    %145 = vector.broadcast %144 : vector<8x1xf32> to vector<8x32xf32>
    %146 = arith.mulf %141, %145 : vector<8x32xf32>
    %147 = vector.broadcast %127 : vector<1x32xf32> to vector<8x32xf32>
    %148 = arith.mulf %146, %147 : vector<8x32xf32>
    %149 = vector.broadcast %128 : vector<1x32xf32> to vector<8x32xf32>
    %150 = arith.addf %148, %149 : vector<8x32xf32>
    %cst_54 = arith.constant 0.000000e+00 : f32
    %151 = vector.shape_cast %9 : vector<8x1xi1> to vector<8x1xi1>
    %152 = vector.broadcast %151 : vector<8x1xi1> to vector<8x32xi1>
    %153 = vector.broadcast %cst_54 : f32 to vector<8x32xf32>
    %154 = arith.select %152, %153, %150 : vector<8x32xi1>, vector<8x32xf32>
    %c0_55 = arith.constant 0 : index
    %c0_56 = arith.constant 0 : index
    %c0_57 = arith.constant 0 : index
    %155 = vector.load %arg15[%c0_55, %c0_56, %c0_57] : memref<2x8x32xf32, #tpu.memory_space<vmem>>, vector<1x8x32xf32>
    %156 = vector.shape_cast %155 : vector<1x8x32xf32> to vector<8x32xf32>
    %157 = vector.shape_cast %154 : vector<8x32xf32> to vector<1x8x32xf32>
    tpu.vector_store %arg15[%c0_55, %c0_56, %c0_57], %157 {strides = array<i32>} : memref<2x8x32xf32, #tpu.memory_space<vmem>>, vector<1x8x32xf32>,
    %c1 = arith.constant 1 : index
    %c0_58 = arith.constant 0 : index
    %c0_59 = arith.constant 0 : index
    %158 = vector.load %arg2[%c1, %c0_58, %c0_59] : memref<2x8x32xf32, #tpu.memory_space<vmem>>, vector<1x8x32xf32>
    %159 = vector.shape_cast %158 : vector<1x8x32xf32> to vector<8x32xf32>
    %c1_i32 = arith.constant 1 : i32
    %160 = arith.addi %0, %c1_i32 : i32
    %161 = arith.index_cast %160 : i32 to index
    %162 = memref.load %arg1[%161] : memref<2xi32, #tpu.memory_space<smem>>
    %163 = vector.broadcast %162 : i32 to vector<8x1xi32>
    %164 = arith.cmpi sge, %1, %163 : vector<8x1xi32>
    %165 = vector.broadcast %162 : i32 to vector<8x8xi32>
    %166 = arith.cmpi sge, %2, %165 : vector<8x8xi32>
    %c0_60 = arith.constant 0 : index
    %c0_61 = arith.constant 0 : index
    %167 = vector.load %arg3[%c0_60, %c0_61] : memref<32x96xbf16, #tpu.memory_space<vmem>>, vector<32x96xbf16>
    %168 = arith.truncf %159 : vector<8x32xf32> to vector<8x32xbf16>
    %cst_62 = arith.constant dense<0.000000e+00> : vector<8x96xf32>
    %169 = tpu.matmul %168, %167, %cst_62 {dimension_numbers = #tpu.dot_dimension_numbers<[1], [0], [0], [1], [0, 0, 1, 1], [], []>} : vector<8x32xbf16>, vector<32x96xbf16>, vector<8x96xf32> -> vector<8x96xf32>
    %c0_63 = arith.constant 0 : index
    %c0_64 = arith.constant 0 : index
    %170 = vector.load %arg4[%c0_63, %c0_64] : memref<1x96xf32, #tpu.memory_space<vmem>>, vector<1x96xf32>
    %171 = vector.broadcast %170 : vector<1x96xf32> to vector<8x96xf32>
    %172 = arith.addf %169, %171 : vector<8x96xf32>
    %173 = vector.extract_strided_slice %172 {offsets = [0, 0], sizes = [8, 16], strides = [1, 1]} : vector<8x96xf32> to vector<8x16xf32>
    %174 = vector.extract_strided_slice %172 {offsets = [0, 32], sizes = [8, 16], strides = [1, 1]} : vector<8x96xf32> to vector<8x16xf32>
    %175 = vector.extract_strided_slice %172 {offsets = [0, 64], sizes = [8, 16], strides = [1, 1]} : vector<8x96xf32> to vector<8x16xf32>
    %176 = arith.truncf %173 : vector<8x16xf32> to vector<8x16xbf16>
    %177 = arith.truncf %174 : vector<8x16xf32> to vector<8x16xbf16>
    %cst_65 = arith.constant dense<0.000000e+00> : vector<8x8xf32>
    %178 = tpu.matmul %176, %177, %cst_65 {dimension_numbers = #tpu.dot_dimension_numbers<[1], [1], [0], [0], [0, 0, 1, 0], [], []>} : vector<8x16xbf16>, vector<8x16xbf16>, vector<8x8xf32> -> vector<8x8xf32>
    %cst_66 = arith.constant 2.500000e-01 : f32
    %179 = vector.broadcast %cst_66 : f32 to vector<8x8xf32>
    %180 = arith.mulf %178, %179 : vector<8x8xf32>
    %cst_67 = arith.constant -1.000000e+09 : f32
    %181 = vector.broadcast %cst_67 : f32 to vector<8x8xf32>
    %182 = arith.select %166, %181, %180 : vector<8x8xi1>, vector<8x8xf32>
    %cst_68 = arith.constant dense<0xFF800000> : vector<8xf32>
    %183 = vector.multi_reduction <maximumf>, %182, %cst_68 [1] : vector<8x8xf32> to vector<8xf32>
    %184 = vector.shape_cast %183 : vector<8xf32> to vector<8x1xf32>
    %185 = vector.broadcast %184 : vector<8x1xf32> to vector<8x8xf32>
    %186 = arith.subf %182, %185 : vector<8x8xf32>
    %187 = math.exp %186 : vector<8x8xf32>
    %cst_69 = arith.constant dense<0.000000e+00> : vector<8xf32>
    %188 = vector.multi_reduction <add>, %187, %cst_69 [1] : vector<8x8xf32> to vector<8xf32>
    %189 = vector.shape_cast %188 : vector<8xf32> to vector<8x1xf32>
    %190 = tpu.reciprocal %189 {approx = true} : vector<8x1xf32> -> vector<8x1xf32>
    %191 = vector.broadcast %190 : vector<8x1xf32> to vector<8x8xf32>
    %192 = arith.mulf %187, %191 : vector<8x8xf32>
    %193 = arith.truncf %192 : vector<8x8xf32> to vector<8x8xbf16>
    %194 = arith.truncf %175 : vector<8x16xf32> to vector<8x16xbf16>
    %cst_70 = arith.constant dense<0.000000e+00> : vector<8x16xf32>
    %195 = tpu.matmul %193, %194, %cst_70 {dimension_numbers = #tpu.dot_dimension_numbers<[1], [0], [0], [1], [0, 0, 1, 1], [], []>} : vector<8x8xbf16>, vector<8x16xbf16>, vector<8x16xf32> -> vector<8x16xf32>
    %196 = vector.extract_strided_slice %172 {offsets = [0, 16], sizes = [8, 16], strides = [1, 1]} : vector<8x96xf32> to vector<8x16xf32>
    %197 = vector.extract_strided_slice %172 {offsets = [0, 48], sizes = [8, 16], strides = [1, 1]} : vector<8x96xf32> to vector<8x16xf32>
    %198 = vector.extract_strided_slice %172 {offsets = [0, 80], sizes = [8, 16], strides = [1, 1]} : vector<8x96xf32> to vector<8x16xf32>
    %199 = arith.truncf %196 : vector<8x16xf32> to vector<8x16xbf16>
    %200 = arith.truncf %197 : vector<8x16xf32> to vector<8x16xbf16>
    %cst_71 = arith.constant dense<0.000000e+00> : vector<8x8xf32>
    %201 = tpu.matmul %199, %200, %cst_71 {dimension_numbers = #tpu.dot_dimension_numbers<[1], [1], [0], [0], [0, 0, 1, 0], [], []>} : vector<8x16xbf16>, vector<8x16xbf16>, vector<8x8xf32> -> vector<8x8xf32>
    %cst_72 = arith.constant 2.500000e-01 : f32
    %202 = vector.broadcast %cst_72 : f32 to vector<8x8xf32>
    %203 = arith.mulf %201, %202 : vector<8x8xf32>
    %cst_73 = arith.constant -1.000000e+09 : f32
    %204 = vector.broadcast %cst_73 : f32 to vector<8x8xf32>
    %205 = arith.select %166, %204, %203 : vector<8x8xi1>, vector<8x8xf32>
    %cst_74 = arith.constant dense<0xFF800000> : vector<8xf32>
    %206 = vector.multi_reduction <maximumf>, %205, %cst_74 [1] : vector<8x8xf32> to vector<8xf32>
    %207 = vector.shape_cast %206 : vector<8xf32> to vector<8x1xf32>
    %208 = vector.broadcast %207 : vector<8x1xf32> to vector<8x8xf32>
    %209 = arith.subf %205, %208 : vector<8x8xf32>
    %210 = math.exp %209 : vector<8x8xf32>
    %cst_75 = arith.constant dense<0.000000e+00> : vector<8xf32>
    %211 = vector.multi_reduction <add>, %210, %cst_75 [1] : vector<8x8xf32> to vector<8xf32>
    %212 = vector.shape_cast %211 : vector<8xf32> to vector<8x1xf32>
    %213 = tpu.reciprocal %212 {approx = true} : vector<8x1xf32> -> vector<8x1xf32>
    %214 = vector.broadcast %213 : vector<8x1xf32> to vector<8x8xf32>
    %215 = arith.mulf %210, %214 : vector<8x8xf32>
    %216 = arith.truncf %215 : vector<8x8xf32> to vector<8x8xbf16>
    %217 = arith.truncf %198 : vector<8x16xf32> to vector<8x16xbf16>
    %cst_76 = arith.constant dense<0.000000e+00> : vector<8x16xf32>
    %218 = tpu.matmul %216, %217, %cst_76 {dimension_numbers = #tpu.dot_dimension_numbers<[1], [0], [0], [1], [0, 0, 1, 1], [], []>} : vector<8x8xbf16>, vector<8x16xbf16>, vector<8x16xf32> -> vector<8x16xf32>
    %219 = tpu.concatenate %195, %218 in 1 : vector<8x16xf32>, vector<8x16xf32> -> vector<8x32xf32>
    %c0_77 = arith.constant 0 : index
    %c0_78 = arith.constant 0 : index
    %220 = vector.load %arg5[%c0_77, %c0_78] : memref<32x32xbf16, #tpu.memory_space<vmem>>, vector<32x32xbf16>
    %221 = arith.truncf %219 : vector<8x32xf32> to vector<8x32xbf16>
    %cst_79 = arith.constant dense<0.000000e+00> : vector<8x32xf32>
    %222 = tpu.matmul %221, %220, %cst_79 {dimension_numbers = #tpu.dot_dimension_numbers<[1], [0], [0], [1], [0, 0, 1, 1], [], []>} : vector<8x32xbf16>, vector<32x32xbf16>, vector<8x32xf32> -> vector<8x32xf32>
    %c0_80 = arith.constant 0 : index
    %c0_81 = arith.constant 0 : index
    %223 = vector.load %arg6[%c0_80, %c0_81] : memref<1x32xf32, #tpu.memory_space<vmem>>, vector<1x32xf32>
    %224 = vector.broadcast %223 : vector<1x32xf32> to vector<8x32xf32>
    %225 = arith.addf %222, %224 : vector<8x32xf32>
    %226 = arith.addf %225, %159 : vector<8x32xf32>
    %c0_82 = arith.constant 0 : index
    %c0_83 = arith.constant 0 : index
    %227 = vector.load %arg7[%c0_82, %c0_83] : memref<1x32xf32, #tpu.memory_space<vmem>>, vector<1x32xf32>
    %c0_84 = arith.constant 0 : index
    %c0_85 = arith.constant 0 : index
    %228 = vector.load %arg8[%c0_84, %c0_85] : memref<1x32xf32, #tpu.memory_space<vmem>>, vector<1x32xf32>
    %cst_86 = arith.constant dense<0.000000e+00> : vector<8xf32>
    %229 = vector.multi_reduction <add>, %226, %cst_86 [1] : vector<8x32xf32> to vector<8xf32>
    %230 = vector.shape_cast %229 : vector<8xf32> to vector<8x1xf32>
    %cst_87 = arith.constant 3.200000e+01 : f32
    %231 = vector.broadcast %cst_87 : f32 to vector<8x1xf32>
    %232 = arith.divf %230, %231 : vector<8x1xf32>
    %233 = vector.broadcast %232 : vector<8x1xf32> to vector<8x32xf32>
    %234 = arith.subf %226, %233 : vector<8x32xf32>
    %235 = arith.mulf %234, %234 : vector<8x32xf32>
    %cst_88 = arith.constant dense<0.000000e+00> : vector<8xf32>
    %236 = vector.multi_reduction <add>, %235, %cst_88 [1] : vector<8x32xf32> to vector<8xf32>
    %237 = vector.shape_cast %236 : vector<8xf32> to vector<8x1xf32>
    %cst_89 = arith.constant 3.200000e+01 : f32
    %238 = vector.broadcast %cst_89 : f32 to vector<8x1xf32>
    %239 = arith.divf %237, %238 : vector<8x1xf32>
    %240 = vector.broadcast %232 : vector<8x1xf32> to vector<8x32xf32>
    %241 = arith.subf %226, %240 : vector<8x32xf32>
    %cst_90 = arith.constant 9.99999974E-6 : f32
    %242 = vector.broadcast %cst_90 : f32 to vector<8x1xf32>
    %243 = arith.addf %239, %242 : vector<8x1xf32>
    %244 = math.rsqrt %243 : vector<8x1xf32>
    %245 = vector.broadcast %244 : vector<8x1xf32> to vector<8x32xf32>
    %246 = arith.mulf %241, %245 : vector<8x32xf32>
    %247 = vector.broadcast %227 : vector<1x32xf32> to vector<8x32xf32>
    %248 = arith.mulf %246, %247 : vector<8x32xf32>
    %249 = vector.broadcast %228 : vector<1x32xf32> to vector<8x32xf32>
    %250 = arith.addf %248, %249 : vector<8x32xf32>
    %cst_91 = arith.constant 0.000000e+00 : f32
    %251 = vector.shape_cast %164 : vector<8x1xi1> to vector<8x1xi1>
    %252 = vector.broadcast %251 : vector<8x1xi1> to vector<8x32xi1>
    %253 = vector.broadcast %cst_91 : f32 to vector<8x32xf32>
    %254 = arith.select %252, %253, %250 : vector<8x32xi1>, vector<8x32xf32>
    %cst_92 = arith.constant 0.000000e+00 : f32
    %255 = vector.broadcast %cst_92 : f32 to vector<8x32xf32>
    %256 = tpu.concatenate %255, %254, %255 in 0 : vector<8x32xf32>, vector<8x32xf32>, vector<8x32xf32> -> vector<24x32xf32>
    %257 = vector.extract_strided_slice %256 {offsets = [4, 0], sizes = [8, 32], strides = [1, 1]} : vector<24x32xf32> to vector<8x32xf32>
    %258 = vector.extract_strided_slice %256 {offsets = [5, 0], sizes = [8, 32], strides = [1, 1]} : vector<24x32xf32> to vector<8x32xf32>
    %259 = vector.extract_strided_slice %256 {offsets = [6, 0], sizes = [8, 32], strides = [1, 1]} : vector<24x32xf32> to vector<8x32xf32>
    %260 = vector.extract_strided_slice %256 {offsets = [7, 0], sizes = [8, 32], strides = [1, 1]} : vector<24x32xf32> to vector<8x32xf32>
    %261 = vector.extract_strided_slice %256 {offsets = [8, 0], sizes = [8, 32], strides = [1, 1]} : vector<24x32xf32> to vector<8x32xf32>
    %262 = vector.extract_strided_slice %256 {offsets = [9, 0], sizes = [8, 32], strides = [1, 1]} : vector<24x32xf32> to vector<8x32xf32>
    %263 = vector.extract_strided_slice %256 {offsets = [10, 0], sizes = [8, 32], strides = [1, 1]} : vector<24x32xf32> to vector<8x32xf32>
    %264 = vector.extract_strided_slice %256 {offsets = [11, 0], sizes = [8, 32], strides = [1, 1]} : vector<24x32xf32> to vector<8x32xf32>
    %265 = vector.extract_strided_slice %256 {offsets = [12, 0], sizes = [8, 32], strides = [1, 1]} : vector<24x32xf32> to vector<8x32xf32>
    %266 = tpu.concatenate %257, %258, %259, %260, %261, %262, %263, %264, %265 in 1 : vector<8x32xf32>, vector<8x32xf32>, vector<8x32xf32>, vector<8x32xf32>, vector<8x32xf32>, vector<8x32xf32>, vector<8x32xf32>, vector<8x32xf32>, vector<8x32xf32> -> vector<8x288xf32>
    %c0_93 = arith.constant 0 : index
    %c0_94 = arith.constant 0 : index
    %267 = vector.load %arg9[%c0_93, %c0_94] : memref<288x64xbf16, #tpu.memory_space<vmem>>, vector<288x64xbf16>
    %268 = arith.truncf %266 : vector<8x288xf32> to vector<8x288xbf16>
    %cst_95 = arith.constant dense<0.000000e+00> : vector<8x64xf32>
    %269 = tpu.matmul %268, %267, %cst_95 {dimension_numbers = #tpu.dot_dimension_numbers<[1], [0], [0], [1], [0, 0, 1, 1], [], []>} : vector<8x288xbf16>, vector<288x64xbf16>, vector<8x64xf32> -> vector<8x64xf32>
    %c0_96 = arith.constant 0 : index
    %c0_97 = arith.constant 0 : index
    %270 = vector.load %arg10[%c0_96, %c0_97] : memref<1x64xf32, #tpu.memory_space<vmem>>, vector<1x64xf32>
    %271 = vector.broadcast %270 : vector<1x64xf32> to vector<8x64xf32>
    %272 = arith.addf %269, %271 : vector<8x64xf32>
    %cst_98 = arith.constant 0.000000e+00 : f32
    %273 = vector.broadcast %cst_98 : f32 to vector<8x64xf32>
    %274 = arith.maximumf %272, %273 : vector<8x64xf32>
    %c0_99 = arith.constant 0 : index
    %c0_100 = arith.constant 0 : index
    %275 = vector.load %arg11[%c0_99, %c0_100] : memref<64x32xbf16, #tpu.memory_space<vmem>>, vector<64x32xbf16>
    %276 = arith.truncf %274 : vector<8x64xf32> to vector<8x64xbf16>
    %cst_101 = arith.constant dense<0.000000e+00> : vector<8x32xf32>
    %277 = tpu.matmul %276, %275, %cst_101 {dimension_numbers = #tpu.dot_dimension_numbers<[1], [0], [0], [1], [0, 0, 1, 1], [], []>} : vector<8x64xbf16>, vector<64x32xbf16>, vector<8x32xf32> -> vector<8x32xf32>
    %c0_102 = arith.constant 0 : index
    %c0_103 = arith.constant 0 : index
    %278 = vector.load %arg12[%c0_102, %c0_103] : memref<1x32xf32, #tpu.memory_space<vmem>>, vector<1x32xf32>
    %279 = vector.broadcast %278 : vector<1x32xf32> to vector<8x32xf32>
    %280 = arith.addf %277, %279 : vector<8x32xf32>
    %281 = arith.addf %280, %254 : vector<8x32xf32>
    %c0_104 = arith.constant 0 : index
    %c0_105 = arith.constant 0 : index
    %282 = vector.load %arg13[%c0_104, %c0_105] : memref<1x32xf32, #tpu.memory_space<vmem>>, vector<1x32xf32>
    %c0_106 = arith.constant 0 : index
    %c0_107 = arith.constant 0 : index
    %283 = vector.load %arg14[%c0_106, %c0_107] : memref<1x32xf32, #tpu.memory_space<vmem>>, vector<1x32xf32>
    %cst_108 = arith.constant dense<0.000000e+00> : vector<8xf32>
    %284 = vector.multi_reduction <add>, %281, %cst_108 [1] : vector<8x32xf32> to vector<8xf32>
    %285 = vector.shape_cast %284 : vector<8xf32> to vector<8x1xf32>
    %cst_109 = arith.constant 3.200000e+01 : f32
    %286 = vector.broadcast %cst_109 : f32 to vector<8x1xf32>
    %287 = arith.divf %285, %286 : vector<8x1xf32>
    %288 = vector.broadcast %287 : vector<8x1xf32> to vector<8x32xf32>
    %289 = arith.subf %281, %288 : vector<8x32xf32>
    %290 = arith.mulf %289, %289 : vector<8x32xf32>
    %cst_110 = arith.constant dense<0.000000e+00> : vector<8xf32>
    %291 = vector.multi_reduction <add>, %290, %cst_110 [1] : vector<8x32xf32> to vector<8xf32>
    %292 = vector.shape_cast %291 : vector<8xf32> to vector<8x1xf32>
    %cst_111 = arith.constant 3.200000e+01 : f32
    %293 = vector.broadcast %cst_111 : f32 to vector<8x1xf32>
    %294 = arith.divf %292, %293 : vector<8x1xf32>
    %295 = vector.broadcast %287 : vector<8x1xf32> to vector<8x32xf32>
    %296 = arith.subf %281, %295 : vector<8x32xf32>
    %cst_112 = arith.constant 9.99999974E-6 : f32
    %297 = vector.broadcast %cst_112 : f32 to vector<8x1xf32>
    %298 = arith.addf %294, %297 : vector<8x1xf32>
    %299 = math.rsqrt %298 : vector<8x1xf32>
    %300 = vector.broadcast %299 : vector<8x1xf32> to vector<8x32xf32>
    %301 = arith.mulf %296, %300 : vector<8x32xf32>
    %302 = vector.broadcast %282 : vector<1x32xf32> to vector<8x32xf32>
    %303 = arith.mulf %301, %302 : vector<8x32xf32>
    %304 = vector.broadcast %283 : vector<1x32xf32> to vector<8x32xf32>
    %305 = arith.addf %303, %304 : vector<8x32xf32>
    %cst_113 = arith.constant 0.000000e+00 : f32
    %306 = vector.shape_cast %164 : vector<8x1xi1> to vector<8x1xi1>
    %307 = vector.broadcast %306 : vector<8x1xi1> to vector<8x32xi1>
    %308 = vector.broadcast %cst_113 : f32 to vector<8x32xf32>
    %309 = arith.select %307, %308, %305 : vector<8x32xi1>, vector<8x32xf32>
    %c1_114 = arith.constant 1 : index
    %c0_115 = arith.constant 0 : index
    %c0_116 = arith.constant 0 : index
    %310 = vector.load %arg15[%c1_114, %c0_115, %c0_116] : memref<2x8x32xf32, #tpu.memory_space<vmem>>, vector<1x8x32xf32>
    %311 = vector.shape_cast %310 : vector<1x8x32xf32> to vector<8x32xf32>
    %312 = vector.shape_cast %309 : vector<8x32xf32> to vector<1x8x32xf32>
    tpu.vector_store %arg15[%c1_114, %c0_115, %c0_116], %312 {strides = array<i32>} : memref<2x8x32xf32, #tpu.memory_space<vmem>>, vector<1x8x32xf32>,
    return
  }
  func.func @transform_0(%arg0: i32, %arg1: memref<2xi32, #tpu.memory_space<smem>>) -> (i32, i32, i32) {
    %c0_i32 = arith.constant 0 : i32
    %c0_i32_0 = arith.constant 0 : i32
    %c0_i32_1 = arith.constant 0 : i32
    return %arg0, %c0_i32, %c0_i32_0 : i32, i32, i32
  }
  func.func @transform_1(%arg0: i32, %arg1: memref<2xi32, #tpu.memory_space<smem>>) -> (i32, i32) {
    %c0_i32 = arith.constant 0 : i32
    %c0_i32_0 = arith.constant 0 : i32
    %c0_i32_1 = arith.constant 0 : i32
    return %c0_i32, %c0_i32_0 : i32, i32
  }
  func.func @transform_2(%arg0: i32, %arg1: memref<2xi32, #tpu.memory_space<smem>>) -> (i32, i32) {
    %c0_i32 = arith.constant 0 : i32
    %c0_i32_0 = arith.constant 0 : i32
    %c0_i32_1 = arith.constant 0 : i32
    return %c0_i32, %c0_i32_0 : i32, i32
  }
  func.func @transform_3(%arg0: i32, %arg1: memref<2xi32, #tpu.memory_space<smem>>) -> (i32, i32) {
    %c0_i32 = arith.constant 0 : i32
    %c0_i32_0 = arith.constant 0 : i32
    %c0_i32_1 = arith.constant 0 : i32
    return %c0_i32, %c0_i32_0 : i32, i32
  }
  func.func @transform_4(%arg0: i32, %arg1: memref<2xi32, #tpu.memory_space<smem>>) -> (i32, i32) {
    %c0_i32 = arith.constant 0 : i32
    %c0_i32_0 = arith.constant 0 : i32
    %c0_i32_1 = arith.constant 0 : i32
    return %c0_i32, %c0_i32_0 : i32, i32
  }
  func.func @transform_5(%arg0: i32, %arg1: memref<2xi32, #tpu.memory_space<smem>>) -> (i32, i32) {
    %c0_i32 = arith.constant 0 : i32
    %c0_i32_0 = arith.constant 0 : i32
    %c0_i32_1 = arith.constant 0 : i32
    return %c0_i32, %c0_i32_0 : i32, i32
  }
  func.func @transform_6(%arg0: i32, %arg1: memref<2xi32, #tpu.memory_space<smem>>) -> (i32, i32) {
    %c0_i32 = arith.constant 0 : i32
    %c0_i32_0 = arith.constant 0 : i32
    %c0_i32_1 = arith.constant 0 : i32
    return %c0_i32, %c0_i32_0 : i32, i32
  }
  func.func @transform_7(%arg0: i32, %arg1: memref<2xi32, #tpu.memory_space<smem>>) -> (i32, i32) {
    %c0_i32 = arith.constant 0 : i32
    %c0_i32_0 = arith.constant 0 : i32
    %c0_i32_1 = arith.constant 0 : i32
    return %c0_i32, %c0_i32_0 : i32, i32
  }
  func.func @transform_8(%arg0: i32, %arg1: memref<2xi32, #tpu.memory_space<smem>>) -> (i32, i32) {
    %c0_i32 = arith.constant 0 : i32
    %c0_i32_0 = arith.constant 0 : i32
    %c0_i32_1 = arith.constant 0 : i32
    return %c0_i32, %c0_i32_0 : i32, i32
  }
  func.func @transform_9(%arg0: i32, %arg1: memref<2xi32, #tpu.memory_space<smem>>) -> (i32, i32) {
    %c0_i32 = arith.constant 0 : i32
    %c0_i32_0 = arith.constant 0 : i32
    %c0_i32_1 = arith.constant 0 : i32
    return %c0_i32, %c0_i32_0 : i32, i32
  }
  func.func @transform_10(%arg0: i32, %arg1: memref<2xi32, #tpu.memory_space<smem>>) -> (i32, i32) {
    %c0_i32 = arith.constant 0 : i32
    %c0_i32_0 = arith.constant 0 : i32
    %c0_i32_1 = arith.constant 0 : i32
    return %c0_i32, %c0_i32_0 : i32, i32
  }
  func.func @transform_11(%arg0: i32, %arg1: memref<2xi32, #tpu.memory_space<smem>>) -> (i32, i32) {
    %c0_i32 = arith.constant 0 : i32
    %c0_i32_0 = arith.constant 0 : i32
    %c0_i32_1 = arith.constant 0 : i32
    return %c0_i32, %c0_i32_0 : i32, i32
  }
  func.func @transform_12(%arg0: i32, %arg1: memref<2xi32, #tpu.memory_space<smem>>) -> (i32, i32) {
    %c0_i32 = arith.constant 0 : i32
    %c0_i32_0 = arith.constant 0 : i32
    %c0_i32_1 = arith.constant 0 : i32
    return %c0_i32, %c0_i32_0 : i32, i32
  }
  func.func @transform_13(%arg0: i32, %arg1: memref<2xi32, #tpu.memory_space<smem>>) -> (i32, i32, i32) {
    %c0_i32 = arith.constant 0 : i32
    %c0_i32_0 = arith.constant 0 : i32
    %c0_i32_1 = arith.constant 0 : i32
    return %arg0, %c0_i32, %c0_i32_0 : i32, i32, i32
  }
}

</mosaic_0001>

<llo_original>
// kernel: tpu_custom_call.1
$region0: #{tpu_custom_call.1}
  #allocation0 [shape = 'u32[]', space=smem, size = 0x4, offset = 0x4, fixed_abs, tag = 'smem constant byte address 0x4 - core index']
  #allocation1 [shape = 'u32[144,128]{1,0:T(1,128)}', space=vmem, size = 0x12000, scoped, tag = 'internal scratch']
  #allocation2 [shape = 's32[1]{0}', space=sflag, size = 0x4, scoped, tag = 'scoped memory for tpu_custom_call.1']
  #allocation3 [shape = 'u8[512]{0}', space=smem, size = 0x200, scoped, tag = 'prefetched SMEM operand 0']
  %s0 = inlined_call_operand.vmem [shape: s32[2], index: 0, kind: input, shape index: {}]
  %s1 = inlined_call_operand.vmem [shape: f32[2,8,32], index: 1, kind: input, shape index: {}]
  %s2 = inlined_call_operand.vmem [shape: bf16[32,96], index: 2, kind: input, shape index: {}]
  %s3 = inlined_call_operand.vmem [shape: f32[1,96], index: 3, kind: input, shape index: {}]
  %s4 = inlined_call_operand.vmem [shape: bf16[32,32], index: 4, kind: input, shape index: {}]
  %s5 = inlined_call_operand.vmem [shape: f32[1,32], index: 5, kind: input, shape index: {}]
  %s6 = inlined_call_operand.vmem [shape: f32[1,32], index: 6, kind: input, shape index: {}]
  %s7 = inlined_call_operand.vmem [shape: f32[1,32], index: 7, kind: input, shape index: {}]
  %s8 = inlined_call_operand.vmem [shape: bf16[288,64], index: 8, kind: input, shape index: {}]
  %s9 = inlined_call_operand.vmem [shape: f32[1,64], index: 9, kind: input, shape index: {}]
  %s10 = inlined_call_operand.vmem [shape: bf16[64,32], index: 10, kind: input, shape index: {}]
  %s11 = inlined_call_operand.vmem [shape: f32[1,32], index: 11, kind: input, shape index: {}]
  %s12 = inlined_call_operand.vmem [shape: f32[1,32], index: 12, kind: input, shape index: {}]
  %s13 = inlined_call_operand.vmem [shape: f32[1,32], index: 13, kind: input, shape index: {}]
  %s14 = inlined_call_operand.hbm [shape: f32[2,8,32], index: 14, kind: output, shape index: {}]
  %s15 = sld [smem:[#allocation0]]
  $region62: #{tpu_custom_call.1} parent=0
    _
  %s17 = ssub.s32 1, %s15
  %s18 = scalar_select 0, %s17, %s15
  %s19 = sshll.u32 %s0, 4
  %s20 = int_to_ptr.vmem [resolvable:$true] %s19
  %22 = dma.vmem_to_smem %s20, 16, [#allocation3], [#allocation2]
  %23 = dma.done [#allocation2], 16
  %24 = sfence
  $region1: #{tpu_custom_call.1} parent=0
    #allocation4 [shape = 'u8[8192]{0}', space=vmem, size = 0x2000, scoped, tag = 'output window, operand 0, single buffered']
    #allocation5 [shape = 's32[1]{0}', space=sflag, size = 0x4, scoped, tag = 'scoped memory for tpu_custom_call.1']
    %25 = vsyncpa [#allocation5], 0
    // Predicated region
    $region2: #{tpu_custom_call.1} parent=1 // pred_check
      _
    $region3: #{tpu_custom_call.1} parent=1 // pred_check_branch
      %27 = sbr.rel (0) target = $region5
    $region4: #{tpu_custom_call.1} parent=1 // pred_region
      _
    $region5: #{tpu_custom_call.1} parent=1 // pred_fallthru
      _
    // Predicated region
    $region6: #{tpu_custom_call.1} parent=1 // pred_check
      _
    $region7: #{tpu_custom_call.1} parent=1 // pred_check_branch
      %29 = sbr.rel (0) target = $region9
    $region8: #{tpu_custom_call.1} parent=1 // pred_region
      _
    $region9: #{tpu_custom_call.1} parent=1 // pred_fallthru
      _
    // Predicated region
    $region10: #{tpu_custom_call.1} parent=1 // pred_check
      _
    $region11: #{tpu_custom_call.1} parent=1 // pred_check_branch
      %31 = sbr.rel (0) target = $region13
    $region12: #{tpu_custom_call.1} parent=1 // pred_region
      _
    $region13: #{tpu_custom_call.1} parent=1 // pred_fallthru
      _
    // Predicated region
    $region14: #{tpu_custom_call.1} parent=1 // pred_check
      _
    $region15: #{tpu_custom_call.1} parent=1 // pred_check_branch
      %33 = sbr.rel (0) target = $region17
    $region16: #{tpu_custom_call.1} parent=1 // pred_region
      _
    $region17: #{tpu_custom_call.1} parent=1 // pred_fallthru
      _
    // Predicated region
    $region18: #{tpu_custom_call.1} parent=1 // pred_check
      _
    $region19: #{tpu_custom_call.1} parent=1 // pred_check_branch
      %35 = sbr.rel (0) target = $region21
    $region20: #{tpu_custom_call.1} parent=1 // pred_region
      _
    $region21: #{tpu_custom_call.1} parent=1 // pred_fallthru
      _
    // Predicated region
    $region22: #{tpu_custom_call.1} parent=1 // pred_check
      _
    $region23: #{tpu_custom_call.1} parent=1 // pred_check_branch
      %37 = sbr.rel (0) target = $region25
    $region24: #{tpu_custom_call.1} parent=1 // pred_region
      _
    $region25: #{tpu_custom_call.1} parent=1 // pred_fallthru
      _
    // Predicated region
    $region26: #{tpu_custom_call.1} parent=1 // pred_check
      _
    $region27: #{tpu_custom_call.1} parent=1 // pred_check_branch
      %39 = sbr.rel (0) target = $region29
    $region28: #{tpu_custom_call.1} parent=1 // pred_region
      _
    $region29: #{tpu_custom_call.1} parent=1 // pred_fallthru
      _
    // Predicated region
    $region30: #{tpu_custom_call.1} parent=1 // pred_check
      _
    $region31: #{tpu_custom_call.1} parent=1 // pred_check_branch
      %41 = sbr.rel (0) target = $region33
    $region32: #{tpu_custom_call.1} parent=1 // pred_region
      _
    $region33: #{tpu_custom_call.1} parent=1 // pred_fallthru
      _
    // Predicated region
    $region34: #{tpu_custom_call.1} parent=1 // pred_check
      _
    $region35: #{tpu_custom_call.1} parent=1 // pred_check_branch
      %43 = sbr.rel (0) target = $region37
    $region36: #{tpu_custom_call.1} parent=1 // pred_region
      _
    $region37: #{tpu_custom_call.1} parent=1 // pred_fallthru
      _
    // Predicated region
    $region38: #{tpu_custom_call.1} parent=1 // pred_check
      _
    $region39: #{tpu_custom_call.1} parent=1 // pred_check_branch
      %45 = sbr.rel (0) target = $region41
    $region40: #{tpu_custom_call.1} parent=1 // pred_region
      _
    $region41: #{tpu_custom_call.1} parent=1 // pred_fallthru
      _
    // Predicated region
    $region42: #{tpu_custom_call.1} parent=1 // pred_check
      _
    $region43: #{tpu_custom_call.1} parent=1 // pred_check_branch
      %47 = sbr.rel (0) target = $region45
    $region44: #{tpu_custom_call.1} parent=1 // pred_region
      _
    $region45: #{tpu_custom_call.1} parent=1 // pred_fallthru
      _
    // Predicated region
    $region46: #{tpu_custom_call.1} parent=1 // pred_check
      _
    $region47: #{tpu_custom_call.1} parent=1 // pred_check_branch
      %49 = sbr.rel (0) target = $region49
    $region48: #{tpu_custom_call.1} parent=1 // pred_region
      _
    $region49: #{tpu_custom_call.1} parent=1 // pred_fallthru
      _
    // Predicated region
    $region50: #{tpu_custom_call.1} parent=1 // pred_check
      _
    $region51: #{tpu_custom_call.1} parent=1 // pred_check_branch
      %51 = sbr.rel (0) target = $region53
    $region52: #{tpu_custom_call.1} parent=1 // pred_region
      _
    $region53: #{tpu_custom_call.1} parent=1 // pred_fallthru
      _
    %s53 = smul.u32 0, 2
    %v54 = vlaneseq
    %v55 = vshrl.u32 %v54, 7
    %v56 = vlaneseq
    %v57 = vand.u32 %v56, 127
    %v58 = vld [vmem:[%s1] sm:$0xff]
    %s59 = sld [smem:[#allocation3 + %s53]]
    %v60 = vstv %s59
    %vm61 = vcmp.ge.s32.totalorder %v55, %v60
    %vm62 = vcmp.ge.s32.totalorder %v57, %v60
    %v63 = vld [vmem:[%s2] sm:$0xf]
    %v64 = vld [vmem:[%s2 + $0x4] sm:$0xf]
    %v65 = vld [vmem:[%s2 + $0x8] sm:$0xf]
    %v66 = vld [vmem:[%s2 + $0xc] sm:$0xf]
    %v67 = vpack.c.bf16 %v58, %v58
    %v68 = vld [vmem:[%s3] sm:$0x1]
    %v70 = vlaneseq
    %v71 = vshrl.u32 %v70, 7
    %v72 = vsub.s32 0, %v71
    %v73 = vrot.slane %v68, %v72
    %v79 = vunpack.c.l.b16 %v63
    %v80 = vunpack.c.l.b16 %v64
    %v81 = vunpack.c.l.b16 %v65
    %v82 = vunpack.c.l.b16 %v66
    %v83 = vpack.c.b16 %v80, %v79
    %v84 = vpack.c.b16 %v82, %v81
    %vm87 = vcmask 261120
    %v89 = vsel %vm87, %v67, 0
    %91 = vmatprep.subr.bf16.mxu0 0
    %92 = vmatpush1.bf16.msra.mxu0 %v83
    %93 = vmatprep.subr.bf16.mxu0 0
    %94 = vmatpush1.bf16.msra.mxu0 %v84
    %95 = vmatprep.subr.bf16.mxu0 0
    %96 = vmatpush1.bf16.msra.mxu0 0
    %97 = vmatprep.subr.bf16.mxu0 0
    %98 = vmatpush1.bf16.msra.mxu0 0
    %99 = vmatprep.subr.bf16.mxu0 0
    %100 = vmatpush1.bf16.msra.mxu0 0
    %101 = vmatprep.subr.bf16.mxu0 0
    %102 = vmatpush1.bf16.msra.mxu0 0
    %103 = vmatprep.subr.bf16.mxu0 0
    %104 = vmatpush1.bf16.msra.mxu0 0
    %105 = vmatprep.subr.bf16.mxu0 0
    %106 = vmatpush1.bf16.msra.mxu0 0
    %107 = vmatprep.subr.bf16.mxu0 0
    %108 = vmatpush1.bf16.msra.mxu0 0
    %109 = vmatprep.subr.bf16.mxu0 0
    %110 = vmatpush1.bf16.msra.mxu0 0
    %111 = vmatprep.subr.bf16.mxu0 0
    %112 = vmatpush1.bf16.msra.mxu0 0
    %113 = vmatprep.subr.bf16.mxu0 0
    %114 = vmatpush1.bf16.msra.mxu0 0
    %115 = vmatprep.subr.bf16.mxu0 0
    %116 = vmatpush1.bf16.msra.mxu0 0
    %117 = vmatprep.subr.bf16.mxu0 0
    %118 = vmatpush1.bf16.msra.mxu0 0
    %119 = vmatprep.subr.bf16.mxu0 0
    %120 = vmatpush1.bf16.msra.mxu0 0
    %121 = vmatprep.subr.bf16.mxu0 0
    %122 = vmatpush1.bf16.msra.mxu0 0
    %123 = vmatprep.mubr.bf16.mxu0 0
    %124 = vmatmul.mubr.bf16.gmra.mrb[0].mxu0 %v89
    %v125 = vpop.f32.mrb[0].mxu0
    %v126 = vadd.f32 %v73, %v125
    %v127 = vpop.f32.mrb[0].mxu0
    %v128 = vpop.f32.mrb[0].mxu0
    %v129 = vpop.f32.mrb[0].mxu0
    %130 = vdwg.mxu0
    %v131 = vpack.c.bf16 %v126, %v126
    %133 = vrot.lane.b32.xlu0 %v131, 96
    %v134 = vpop.permute.xlu0 %133
    %vm135 = vcmask 130048
    %v137 = vsel %vm135, %v131, 0
    %v140 = vsel %vm135, %v134, 0
    %142 = vmatprep.subr.bf16.mxu0 0
    %143 = vmatpush1.bf16.xpose.msra.mxu0 %v140
    %144 = vmatprep.subr.bf16.mxu0 0
    %145 = vmatpush1.bf16.xpose.msra.mxu0 0
    %146 = vmatprep.subr.bf16.mxu0 0
    %147 = vmatpush1.bf16.xpose.msra.mxu0 0
    %148 = vmatprep.subr.bf16.mxu0 0
    %149 = vmatpush1.bf16.xpose.msra.mxu0 0
    %150 = vmatprep.subr.bf16.mxu0 0
    %151 = vmatpush1.bf16.xpose.msra.mxu0 0
    %152 = vmatprep.subr.bf16.mxu0 0
    %153 = vmatpush1.bf16.xpose.msra.mxu0 0
    %154 = vmatprep.subr.bf16.mxu0 0
    %155 = vmatpush1.bf16.xpose.msra.mxu0 0
    %156 = vmatprep.subr.bf16.mxu0 0
    %157 = vmatpush1.bf16.xpose.msra.mxu0 0
    %158 = vmatprep.subr.bf16.mxu0 0
    %159 = vmatpush1.bf16.xpose.msra.mxu0 0
    %160 = vmatprep.subr.bf16.mxu0 0
    %161 = vmatpush1.bf16.xpose.msra.mxu0 0
    %162 = vmatprep.subr.bf16.mxu0 0
    %163 = vmatpush1.bf16.xpose.msra.mxu0 0
    %164 = vmatprep.subr.bf16.mxu0 0
    %165 = vmatpush1.bf16.xpose.msra.mxu0 0
    %166 = vmatprep.subr.bf16.mxu0 0
    %167 = vmatpush1.bf16.xpose.msra.mxu0 0
    %168 = vmatprep.subr.bf16.mxu0 0
    %169 = vmatpush1.bf16.xpose.msra.mxu0 0
    %170 = vmatprep.subr.bf16.mxu0 0
    %171 = vmatpush1.bf16.xpose.msra.mxu0 0
    %172 = vmatprep.subr.bf16.mxu0 0
    %173 = vmatpush1.bf16.xpose.msra.mxu0 0
    %174 = vmatprep.mubr.bf16.mxu0 0
    %175 = vmatmul.mubr.bf16.gmra.mrb[0].mxu0 %v137
    %v176 = vpop.f32.mrb[0].mxu0
    %v177 = vadd.f32 0.0, %v176
    %v178 = vpop.f32.mrb[0].mxu0
    %v179 = vpop.f32.mrb[0].mxu0
    %v180 = vpop.f32.mrb[0].mxu0
    %181 = vdwg.mxu0
    %v182 = vmul.f32 %v177, 0.25
    %v183 = vsel %vm62, -1e+09, %v182
    %vm184 = vcmask 64512
    %v185 = vsel %vm184, %v183, -inf
    %186 = vmax.xlane.f32.xlu0 %v185
    %v187 = vpop.xlane.xlu0 %186
    %v188 = vsub.f32 %v183, %v187
    %v189 = vmul.f32 %v188, 1.442695
    %v190 = vpow.pop %v189
    %v191 = vsel %vm184, %v190, 0.0
    %192 = vadd.xlane.f32.xlu0 %v191
    %v193 = vpop.xlane.xlu0 %192
    %v194 = vrcp.pop %v193
    %v195 = vmul.f32 %v190, %v194
    %v196 = vpack.c.bf16 %v195, %v195
    %197 = vrot.lane.b32.xlu0 %v131, 64
    %v198 = vpop.permute.xlu0 %197
    %v200 = vsel %vm184, %v196, 0
    %vm202 = vcmask 1043456
    %v204 = vsel %vm202, %v198, 0
    %206 = vmatprep.subr.bf16.mxu0 0
    %207 = vmatpush1.bf16.msra.mxu0 %v204
    %208 = vmatprep.subr.bf16.mxu0 0
    %209 = vmatpush1.bf16.msra.mxu0 0
    %210 = vmatprep.subr.bf16.mxu0 0
    %211 = vmatpush1.bf16.msra.mxu0 0
    %212 = vmatprep.subr.bf16.mxu0 0
    %213 = vmatpush1.bf16.msra.mxu0 0
    %214 = vmatprep.subr.bf16.mxu0 0
    %215 = vmatpush1.bf16.msra.mxu0 0
    %216 = vmatprep.subr.bf16.mxu0 0
    %217 = vmatpush1.bf16.msra.mxu0 0
    %218 = vmatprep.subr.bf16.mxu0 0
    %219 = vmatpush1.bf16.msra.mxu0 0
    %220 = vmatprep.subr.bf16.mxu0 0
    %221 = vmatpush1.bf16.msra.mxu0 0
    %222 = vmatprep.subr.bf16.mxu0 0
    %223 = vmatpush1.bf16.msra.mxu0 0
    %224 = vmatprep.subr.bf16.mxu0 0
    %225 = vmatpush1.bf16.msra.mxu0 0
    %226 = vmatprep.subr.bf16.mxu0 0
    %227 = vmatpush1.bf16.msra.mxu0 0
    %228 = vmatprep.subr.bf16.mxu0 0
    %229 = vmatpush1.bf16.msra.mxu0 0
    %230 = vmatprep.subr.bf16.mxu0 0
    %231 = vmatpush1.bf16.msra.mxu0 0
    %232 = vmatprep.subr.bf16.mxu0 0
    %233 = vmatpush1.bf16.msra.mxu0 0
    %234 = vmatprep.subr.bf16.mxu0 0
    %235 = vmatpush1.bf16.msra.mxu0 0
    %236 = vmatprep.subr.bf16.mxu0 0
    %237 = vmatpush1.bf16.msra.mxu0 0
    %238 = vmatprep.mubr.bf16.mxu0 0
    %239 = vmatmul.mubr.bf16.gmra.mrb[0].mxu0 %v200
    %v240 = vpop.f32.mrb[0].mxu0
    %v241 = vadd.f32 0.0, %v240
    %v242 = vpop.f32.mrb[0].mxu0
    %v243 = vpop.f32.mrb[0].mxu0
    %v244 = vpop.f32.mrb[0].mxu0
    %245 = vdwg.mxu0
    %246 = vrot.lane.b32.xlu0 %v131, 112
    %v247 = vpop.permute.xlu0 %246
    %248 = vrot.lane.b32.xlu0 %v131, 80
    %v249 = vpop.permute.xlu0 %248
    %v251 = vsel %vm135, %v247, 0
    %v254 = vsel %vm135, %v249, 0
    %256 = vmatprep.subr.bf16.mxu0 0
    %257 = vmatpush1.bf16.xpose.msra.mxu0 %v254
    %258 = vmatprep.subr.bf16.mxu0 0
    %259 = vmatpush1.bf16.xpose.msra.mxu0 0
    %260 = vmatprep.subr.bf16.mxu0 0
    %261 = vmatpush1.bf16.xpose.msra.mxu0 0
    %262 = vmatprep.subr.bf16.mxu0 0
    %263 = vmatpush1.bf16.xpose.msra.mxu0 0
    %264 = vmatprep.subr.bf16.mxu0 0
    %265 = vmatpush1.bf16.xpose.msra.mxu0 0
    %266 = vmatprep.subr.bf16.mxu0 0
    %267 = vmatpush1.bf16.xpose.msra.mxu0 0
    %268 = vmatprep.subr.bf16.mxu0 0
    %269 = vmatpush1.bf16.xpose.msra.mxu0 0
    %270 = vmatprep.subr.bf16.mxu0 0
    %271 = vmatpush1.bf16.xpose.msra.mxu0 0
    %272 = vmatprep.subr.bf16.mxu0 0
    %273 = vmatpush1.bf16.xpose.msra.mxu0 0
    %274 = vmatprep.subr.bf16.mxu0 0
    %275 = vmatpush1.bf16.xpose.msra.mxu0 0
    %276 = vmatprep.subr.bf16.mxu0 0
    %277 = vmatpush1.bf16.xpose.msra.mxu0 0
    %278 = vmatprep.subr.bf16.mxu0 0
    %279 = vmatpush1.bf16.xpose.msra.mxu0 0
    %280 = vmatprep.subr.bf16.mxu0 0
    %281 = vmatpush1.bf16.xpose.msra.mxu0 0
    %282 = vmatprep.subr.bf16.mxu0 0
    %283 = vmatpush1.bf16.xpose.msra.mxu0 0
    %284 = vmatprep.subr.bf16.mxu0 0
    %285 = vmatpush1.bf16.xpose.msra.mxu0 0
    %286 = vmatprep.subr.bf16.mxu0 0
    %287 = vmatpush1.bf16.xpose.msra.mxu0 0
    %288 = vmatprep.mubr.bf16.mxu0 0
    %289 = vmatmul.mubr.bf16.gmra.mrb[0].mxu0 %v251
    %v290 = vpop.f32.mrb[0].mxu0
    %v291 = vadd.f32 0.0, %v290
    %v292 = vpop.f32.mrb[0].mxu0
    %v293 = vpop.f32.mrb[0].mxu0
    %v294 = vpop.f32.mrb[0].mxu0
    %295 = vdwg.mxu0
    %v296 = vmul.f32 %v291, 0.25
    %v297 = vsel %vm62, -1e+09, %v296
    %v298 = vsel %vm184, %v297, -inf
    %299 = vmax.xlane.f32.xlu0 %v298
    %v300 = vpop.xlane.xlu0 %299
    %v301 = vsub.f32 %v297, %v300
    %v302 = vmul.f32 %v301, 1.442695
    %v303 = vpow.pop %v302
    %v304 = vsel %vm184, %v303, 0.0
    %305 = vadd.xlane.f32.xlu0 %v304
    %v306 = vpop.xlane.xlu0 %305
    %v307 = vrcp.pop %v306
    %v308 = vmul.f32 %v303, %v307
    %v309 = vpack.c.bf16 %v308, %v308
    %310 = vrot.lane.b32.xlu0 %v131, 48
    %v311 = vpop.permute.xlu0 %310
    %v313 = vsel %vm184, %v309, 0
    %v316 = vsel %vm202, %v311, 0
    %318 = vmatprep.subr.bf16.mxu0 0
    %319 = vmatpush1.bf16.msra.mxu0 %v316
    %320 = vmatprep.subr.bf16.mxu0 0
    %321 = vmatpush1.bf16.msra.mxu0 0
    %322 = vmatprep.subr.bf16.mxu0 0
    %323 = vmatpush1.bf16.msra.mxu0 0
    %324 = vmatprep.subr.bf16.mxu0 0
    %325 = vmatpush1.bf16.msra.mxu0 0
    %326 = vmatprep.subr.bf16.mxu0 0
    %327 = vmatpush1.bf16.msra.mxu0 0
    %328 = vmatprep.subr.bf16.mxu0 0
    %329 = vmatpush1.bf16.msra.mxu0 0
    %330 = vmatprep.subr.bf16.mxu0 0
    %331 = vmatpush1.bf16.msra.mxu0 0
    %332 = vmatprep.subr.bf16.mxu0 0
    %333 = vmatpush1.bf16.msra.mxu0 0
    %334 = vmatprep.subr.bf16.mxu0 0
    %335 = vmatpush1.bf16.msra.mxu0 0
    %336 = vmatprep.subr.bf16.mxu0 0
    %337 = vmatpush1.bf16.msra.mxu0 0
    %338 = vmatprep.subr.bf16.mxu0 0
    %339 = vmatpush1.bf16.msra.mxu0 0
    %340 = vmatprep.subr.bf16.mxu0 0
    %341 = vmatpush1.bf16.msra.mxu0 0
    %342 = vmatprep.subr.bf16.mxu0 0
    %343 = vmatpush1.bf16.msra.mxu0 0
    %344 = vmatprep.subr.bf16.mxu0 0
    %345 = vmatpush1.bf16.msra.mxu0 0
    %346 = vmatprep.subr.bf16.mxu0 0
    %347 = vmatpush1.bf16.msra.mxu0 0
    %348 = vmatprep.subr.bf16.mxu0 0
    %349 = vmatpush1.bf16.msra.mxu0 0
    %350 = vmatprep.mubr.bf16.mxu0 0
    %351 = vmatmul.mubr.bf16.gmra.mrb[0].mxu0 %v313
    %v352 = vpop.f32.mrb[0].mxu0
    %v353 = vadd.f32 0.0, %v352
    %v354 = vpop.f32.mrb[0].mxu0
    %v355 = vpop.f32.mrb[0].mxu0
    %v356 = vpop.f32.mrb[0].mxu0
    %357 = vdwg.mxu0
    %359 = vrot.lane.b32.xlu0 %v353, 16
    %v360 = vpop.permute.xlu0 %359
    %v362 = vsel %vm135, %v241, %v360
    %v363 = vld [vmem:[%s4] sm:$0xf]
    %v364 = vld [vmem:[%s4 + $0x4] sm:$0xf]
    %v365 = vld [vmem:[%s4 + $0x8] sm:$0xf]
    %v366 = vld [vmem:[%s4 + $0xc] sm:$0xf]
    %v367 = vpack.c.bf16 %v362, %v362
    %v368 = vld [vmem:[%s5] sm:$0x1]
    %v370 = vlaneseq
    %v371 = vshrl.u32 %v370, 7
    %v372 = vsub.s32 0, %v371
    %v373 = vrot.slane %v368, %v372
    %v379 = vunpack.c.l.b16 %v363
    %v380 = vunpack.c.l.b16 %v364
    %v381 = vunpack.c.l.b16 %v365
    %v382 = vunpack.c.l.b16 %v366
    %v383 = vpack.c.b16 %v380, %v379
    %v384 = vpack.c.b16 %v382, %v381
    %v388 = vsel %vm87, %v367, 0
    %390 = vmatprep.subr.bf16.mxu0 0
    %391 = vmatpush1.bf16.msra.mxu0 %v383
    %392 = vmatprep.subr.bf16.mxu0 0
    %393 = vmatpush1.bf16.msra.mxu0 %v384
    %394 = vmatprep.subr.bf16.mxu0 0
    %395 = vmatpush1.bf16.msra.mxu0 0
    %396 = vmatprep.subr.bf16.mxu0 0
    %397 = vmatpush1.bf16.msra.mxu0 0
    %398 = vmatprep.subr.bf16.mxu0 0
    %399 = vmatpush1.bf16.msra.mxu0 0
    %400 = vmatprep.subr.bf16.mxu0 0
    %401 = vmatpush1.bf16.msra.mxu0 0
    %402 = vmatprep.subr.bf16.mxu0 0
    %403 = vmatpush1.bf16.msra.mxu0 0
    %404 = vmatprep.subr.bf16.mxu0 0
    %405 = vmatpush1.bf16.msra.mxu0 0
    %406 = vmatprep.subr.bf16.mxu0 0
    %407 = vmatpush1.bf16.msra.mxu0 0
    %408 = vmatprep.subr.bf16.mxu0 0
    %409 = vmatpush1.bf16.msra.mxu0 0
    %410 = vmatprep.subr.bf16.mxu0 0
    %411 = vmatpush1.bf16.msra.mxu0 0
    %412 = vmatprep.subr.bf16.mxu0 0
    %413 = vmatpush1.bf16.msra.mxu0 0
    %414 = vmatprep.subr.bf16.mxu0 0
    %415 = vmatpush1.bf16.msra.mxu0 0
    %416 = vmatprep.subr.bf16.mxu0 0
    %417 = vmatpush1.bf16.msra.mxu0 0
    %418 = vmatprep.subr.bf16.mxu0 0
    %419 = vmatpush1.bf16.msra.mxu0 0
    %420 = vmatprep.subr.bf16.mxu0 0
    %421 = vmatpush1.bf16.msra.mxu0 0
    %422 = vmatprep.mubr.bf16.mxu0 0
    %423 = vmatmul.mubr.bf16.gmra.mrb[0].mxu0 %v388
    %v424 = vpop.f32.mrb[0].mxu0
    %v425 = vadd.f32 %v373, %v424
    %v426 = vpop.f32.mrb[0].mxu0
    %v427 = vpop.f32.mrb[0].mxu0
    %v428 = vpop.f32.mrb[0].mxu0
    %429 = vdwg.mxu0
    %v430 = vadd.f32 %v425, %v58
    %v431 = vld [vmem:[%s6] sm:$0x1]
    %v432 = vld [vmem:[%s7] sm:$0x1]
    %v433 = vsel %vm87, %v430, 0.0
    %434 = vadd.xlane.f32.xlu0 %v433
    %v435 = vpop.xlane.xlu0 %434
    %v436 = vrcp.pop 32.0
    %v437 = vmul.f32 %v435, %v436
    %v438 = vsub.f32 %v430, %v437
    %v439 = vmul.f32 %v438, %v438
    %v440 = vsel %vm87, %v439, 0.0
    %441 = vadd.xlane.f32.xlu0 %v440
    %v442 = vpop.xlane.xlu0 %441
    %v443 = vmul.f32 %v442, %v436
    %v444 = vadd.f32 %v443, 1e-05
    %v445 = vrsqrt.pop %v444
    %v446 = vmul.f32 %v438, %v445
    %v448 = vlaneseq
    %v449 = vshrl.u32 %v448, 7
    %v450 = vsub.s32 0, %v449
    %v451 = vrot.slane %v431, %v450
    %v453 = vmul.f32 %v446, %v451
    %v455 = vlaneseq
    %v456 = vshrl.u32 %v455, 7
    %v457 = vsub.s32 0, %v456
    %v458 = vrot.slane %v432, %v457
    %v460 = vadd.f32 %v453, %v458
    %v461 = vsel %vm61, 1, 0
    %vm462 = vcmp.eq.s32.totalorder %v461, 1
    %v463 = vsel %vm462, 0.0, %v460
    %vm466 = vcmask 1046528
    %v467 = vrot.slane 0.0, 1
    %v468 = vrot.slane %v463, 1
    %v469 = vsel %vm466, %v467, %v468
    %470 = vrot.lane.b32.xlu0 %v469, 32
    %v471 = vpop.permute.xlu0 %470
    %472 = vrot.lane.b32.xlu0 %v468, 32
    %v473 = vpop.permute.xlu0 %472
    %vm476 = vcmask 1045504
    %v477 = vrot.slane 0.0, 2
    %v478 = vrot.slane %v463, 2
    %v479 = vsel %vm476, %v477, %v478
    %480 = vrot.lane.b32.xlu0 %v479, 64
    %v481 = vpop.permute.xlu0 %480
    %482 = vrot.lane.b32.xlu0 %v478, 64
    %v483 = vpop.permute.xlu0 %482
    %vm486 = vcmask 1044480
    %v487 = vrot.slane 0.0, 3
    %v488 = vrot.slane %v463, 3
    %v489 = vsel %vm486, %v487, %v488
    %490 = vrot.lane.b32.xlu0 %v489, 96
    %v491 = vpop.permute.xlu0 %490
    %492 = vrot.lane.b32.xlu0 %v488, 96
    %v493 = vpop.permute.xlu0 %492
    %v496 = vrot.slane %v463, 4
    %vm498 = vcmask 1042432
    %v499 = vrot.slane %v463, 5
    %v500 = vrot.slane 0.0, 5
    %v501 = vsel %vm498, %v499, %v500
    %502 = vrot.lane.b32.xlu0 %v499, 32
    %v503 = vpop.permute.xlu0 %502
    %504 = vrot.lane.b32.xlu0 %v501, 32
    %v505 = vpop.permute.xlu0 %504
    %vm508 = vcmask 1041408
    %v509 = vrot.slane %v463, 6
    %v510 = vrot.slane 0.0, 6
    %v511 = vsel %vm508, %v509, %v510
    %512 = vrot.lane.b32.xlu0 %v509, 64
    %v513 = vpop.permute.xlu0 %512
    %514 = vrot.lane.b32.xlu0 %v511, 64
    %v515 = vpop.permute.xlu0 %514
    %vm518 = vcmask 1040384
    %v519 = vrot.slane %v463, 7
    %v520 = vrot.slane 0.0, 7
    %v521 = vsel %vm518, %v519, %v520
    %522 = vrot.lane.b32.xlu0 %v519, 96
    %v523 = vpop.permute.xlu0 %522
    %524 = vrot.lane.b32.xlu0 %v521, 96
    %v525 = vpop.permute.xlu0 %524
    %v528 = vsel %vm87, 0.0, %v471
    %v529 = vsel %vm87, %v463, %v473
    %vm530 = vcmask 523264
    %v531 = vsel %vm530, %v528, %v481
    %v532 = vsel %vm530, %v529, %v483
    %vm533 = vcmask 785408
    %v534 = vsel %vm533, %v531, %v491
    %v535 = vsel %vm533, %v532, %v493
    %v536 = vsel %vm87, %v496, %v503
    %v537 = vsel %vm87, %v496, %v505
    %v538 = vsel %vm530, %v536, %v513
    %v539 = vsel %vm530, %v537, %v515
    %v540 = vsel %vm533, %v538, %v523
    %v541 = vsel %vm533, %v539, %v525
    %v542 = vld [vmem:[%s8] sm:$0xf]
    %v543 = vld [vmem:[%s8 + $0x4] sm:$0xf]
    %v544 = vld [vmem:[%s8 + $0x8] sm:$0xf]
    %v545 = vld [vmem:[%s8 + $0xc] sm:$0xf]
    %v546 = vld [vmem:[%s8 + $0x10] sm:$0xf]
    %v547 = vld [vmem:[%s8 + $0x14] sm:$0xf]
    %v548 = vld [vmem:[%s8 + $0x18] sm:$0xf]
    %v549 = vld [vmem:[%s8 + $0x1c] sm:$0xf]
    %v550 = vld [vmem:[%s8 + $0x20] sm:$0xf]
    %v551 = vld [vmem:[%s8 + $0x24] sm:$0xf]
    %v552 = vld [vmem:[%s8 + $0x28] sm:$0xf]
    %v553 = vld [vmem:[%s8 + $0x2c] sm:$0xf]
    %v554 = vld [vmem:[%s8 + $0x30] sm:$0xf]
    %v555 = vld [vmem:[%s8 + $0x34] sm:$0xf]
    %v556 = vld [vmem:[%s8 + $0x38] sm:$0xf]
    %v557 = vld [vmem:[%s8 + $0x3c] sm:$0xf]
    %v558 = vld [vmem:[%s8 + $0x40] sm:$0xf]
    %v559 = vld [vmem:[%s8 + $0x44] sm:$0xf]
    %v560 = vld [vmem:[%s8 + $0x48] sm:$0xf]
    %v561 = vld [vmem:[%s8 + $0x4c] sm:$0xf]
    %v562 = vld [vmem:[%s8 + $0x50] sm:$0xf]
    %v563 = vld [vmem:[%s8 + $0x54] sm:$0xf]
    %v564 = vld [vmem:[%s8 + $0x58] sm:$0xf]
    %v565 = vld [vmem:[%s8 + $0x5c] sm:$0xf]
    %v566 = vld [vmem:[%s8 + $0x60] sm:$0xf]
    %v567 = vld [vmem:[%s8 + $0x64] sm:$0xf]
    %v568 = vld [vmem:[%s8 + $0x68] sm:$0xf]
    %v569 = vld [vmem:[%s8 + $0x6c] sm:$0xf]
    %v570 = vld [vmem:[%s8 + $0x70] sm:$0xf]
    %v571 = vld [vmem:[%s8 + $0x74] sm:$0xf]
    %v572 = vld [vmem:[%s8 + $0x78] sm:$0xf]
    %v573 = vld [vmem:[%s8 + $0x7c] sm:$0xf]
    %v574 = vld [vmem:[%s8 + $0x80] sm:$0xf]
    %v575 = vld [vmem:[%s8 + $0x84] sm:$0xf]
    %v576 = vld [vmem:[%s8 + $0x88] sm:$0xf]
    %v577 = vld [vmem:[%s8 + $0x8c] sm:$0xf]
    %v578 = vpack.c.bf16 %v535, %v534
    %v579 = vpack.c.bf16 %v541, %v540
    %v580 = vpack.c.bf16 0.0, %v463
    %v581 = vld [vmem:[%s9] sm:$0x1]
    %v583 = vlaneseq
    %v584 = vshrl.u32 %v583, 7
    %v585 = vsub.s32 0, %v584
    %v586 = vrot.slane %v581, %v585
    %v591 = vrot.slane %v578, 2
    %v592 = vrot.slane %v579, 2
    %v593 = vrot.slane %v580, 2
    %v632 = vunpack.c.l.b16 %v542
    %v633 = vunpack.c.l.b16 %v543
    %v634 = vunpack.c.l.b16 %v544
    %v635 = vunpack.c.l.b16 %v545
    %v636 = vunpack.c.l.b16 %v546
    %v637 = vunpack.c.l.b16 %v547
    %v638 = vunpack.c.l.b16 %v548
    %v639 = vunpack.c.l.b16 %v549
    %v640 = vunpack.c.l.b16 %v550
    %v641 = vunpack.c.l.b16 %v551
    %v642 = vunpack.c.l.b16 %v552
    %v643 = vunpack.c.l.b16 %v553
    %v644 = vunpack.c.l.b16 %v554
    %v645 = vunpack.c.l.b16 %v555
    %v646 = vunpack.c.l.b16 %v556
    %v647 = vunpack.c.l.b16 %v557
    %v648 = vunpack.c.l.b16 %v558
    %v649 = vunpack.c.l.b16 %v559
    %v650 = vunpack.c.l.b16 %v560
    %v651 = vunpack.c.l.b16 %v561
    %v652 = vunpack.c.l.b16 %v562
    %v653 = vunpack.c.l.b16 %v563
    %v654 = vunpack.c.l.b16 %v564
    %v655 = vunpack.c.l.b16 %v565
    %v656 = vunpack.c.l.b16 %v566
    %v657 = vunpack.c.l.b16 %v567
    %v658 = vunpack.c.l.b16 %v568
    %v659 = vunpack.c.l.b16 %v569
    %v660 = vunpack.c.l.b16 %v570
    %v661 = vunpack.c.l.b16 %v571
    %v662 = vunpack.c.l.b16 %v572
    %v663 = vunpack.c.l.b16 %v573
    %v664 = vunpack.c.l.b16 %v574
    %v665 = vunpack.c.l.b16 %v575
    %v666 = vunpack.c.l.b16 %v576
    %v667 = vunpack.c.l.b16 %v577
    %v668 = vpack.c.b16 %v633, %v632
    %v669 = vpack.c.b16 %v635, %v634
    %v670 = vpack.c.b16 %v637, %v636
    %v671 = vpack.c.b16 %v639, %v638
    %v672 = vpack.c.b16 %v641, %v640
    %v673 = vpack.c.b16 %v643, %v642
    %v674 = vpack.c.b16 %v645, %v644
    %v675 = vpack.c.b16 %v647, %v646
    %v676 = vpack.c.b16 %v649, %v648
    %v677 = vpack.c.b16 %v651, %v650
    %v678 = vpack.c.b16 %v653, %v652
    %v679 = vpack.c.b16 %v655, %v654
    %v680 = vpack.c.b16 %v657, %v656
    %v681 = vpack.c.b16 %v659, %v658
    %v682 = vpack.c.b16 %v661, %v660
    %v683 = vpack.c.b16 %v663, %v662
    %v684 = vpack.c.b16 %v665, %v664
    %v685 = vpack.c.b16 %v667, %v666
    %v705 = vsel %vm87, %v593, 0
    %707 = vmatprep.subr.bf16.mxu0 0
    %708 = vmatpush1.bf16.msra.mxu0 %v668
    %709 = vmatprep.subr.bf16.mxu0 0
    %710 = vmatpush1.bf16.msra.mxu0 %v669
    %711 = vmatprep.subr.bf16.mxu0 0
    %712 = vmatpush1.bf16.msra.mxu0 %v670
    %713 = vmatprep.subr.bf16.mxu0 0
    %714 = vmatpush1.bf16.msra.mxu0 %v671
    %715 = vmatprep.subr.bf16.mxu0 0
    %716 = vmatpush1.bf16.msra.mxu0 %v672
    %717 = vmatprep.subr.bf16.mxu0 0
    %718 = vmatpush1.bf16.msra.mxu0 %v673
    %719 = vmatprep.subr.bf16.mxu0 0
    %720 = vmatpush1.bf16.msra.mxu0 %v674
    %721 = vmatprep.subr.bf16.mxu0 0
    %722 = vmatpush1.bf16.msra.mxu0 %v675
    %723 = vmatprep.subr.bf16.mxu0 0
    %724 = vmatpush1.bf16.msra.mxu0 %v676
    %725 = vmatprep.subr.bf16.mxu0 0
    %726 = vmatpush1.bf16.msra.mxu0 %v677
    %727 = vmatprep.subr.bf16.mxu0 0
    %728 = vmatpush1.bf16.msra.mxu0 %v678
    %729 = vmatprep.subr.bf16.mxu0 0
    %730 = vmatpush1.bf16.msra.mxu0 %v679
    %731 = vmatprep.subr.bf16.mxu0 0
    %732 = vmatpush1.bf16.msra.mxu0 %v680
    %733 = vmatprep.subr.bf16.mxu0 0
    %734 = vmatpush1.bf16.msra.mxu0 %v681
    %735 = vmatprep.subr.bf16.mxu0 0
    %736 = vmatpush1.bf16.msra.mxu0 %v682
    %737 = vmatprep.subr.bf16.mxu0 0
    %738 = vmatpush1.bf16.msra.mxu0 %v683
    %739 = vmatprep.mubr.bf16.mxu0 %v592
    %740 = vmatmul.mubr.bf16.gmra.mrb[0].mxu0 %v591
    %v741 = vpop.f32.mrb[0].mxu0
    %v742 = vadd.f32 %v586, %v741
    %v743 = vpop.f32.mrb[0].mxu0
    %v744 = vpop.f32.mrb[0].mxu0
    %v745 = vpop.f32.mrb[0].mxu0
    %746 = vdwg.mxu0
    %747 = vmatprep.subr.bf16.mxu0 0
    %748 = vmatpush1.bf16.msra.mxu0 %v684
    %749 = vmatprep.subr.bf16.mxu0 0
    %750 = vmatpush1.bf16.msra.mxu0 %v685
    %751 = vmatprep.subr.bf16.mxu0 0
    %752 = vmatpush1.bf16.msra.mxu0 0
    %753 = vmatprep.subr.bf16.mxu0 0
    %754 = vmatpush1.bf16.msra.mxu0 0
    %755 = vmatprep.subr.bf16.mxu0 0
    %756 = vmatpush1.bf16.msra.mxu0 0
    %757 = vmatprep.subr.bf16.mxu0 0
    %758 = vmatpush1.bf16.msra.mxu0 0
    %759 = vmatprep.subr.bf16.mxu0 0
    %760 = vmatpush1.bf16.msra.mxu0 0
    %761 = vmatprep.subr.bf16.mxu0 0
    %762 = vmatpush1.bf16.msra.mxu0 0
    %763 = vmatprep.subr.bf16.mxu0 0
    %764 = vmatpush1.bf16.msra.mxu0 0
    %765 = vmatprep.subr.bf16.mxu0 0
    %766 = vmatpush1.bf16.msra.mxu0 0
    %767 = vmatprep.subr.bf16.mxu0 0
    %768 = vmatpush1.bf16.msra.mxu0 0
    %769 = vmatprep.subr.bf16.mxu0 0
    %770 = vmatpush1.bf16.msra.mxu0 0
    %771 = vmatprep.subr.bf16.mxu0 0
    %772 = vmatpush1.bf16.msra.mxu0 0
    %773 = vmatprep.subr.bf16.mxu0 0
    %774 = vmatpush1.bf16.msra.mxu0 0
    %775 = vmatprep.subr.bf16.mxu0 0
    %776 = vmatpush1.bf16.msra.mxu0 0
    %777 = vmatprep.subr.bf16.mxu0 0
    %778 = vmatpush1.bf16.msra.mxu0 0
    %779 = vmatprep.mubr.bf16.mxu0 0
    %780 = vmatmul.mubr.bf16.gmra.mrb[0].mxu0 %v705
    %v781 = vpop.f32.mrb[0].mxu0
    %v782 = vadd.f32 %v742, %v781
    %v783 = vpop.f32.mrb[0].mxu0
    %v784 = vpop.f32.mrb[0].mxu0
    %v785 = vpop.f32.mrb[0].mxu0
    %786 = vdwg.mxu0
    %v787 = vmax.f32 %v782, 0.0
    %v788 = vld [vmem:[%s10] sm:$0xf]
    %v789 = vld [vmem:[%s10 + $0x4] sm:$0xf]
    %v790 = vld [vmem:[%s10 + $0x8] sm:$0xf]
    %v791 = vld [vmem:[%s10 + $0xc] sm:$0xf]
    %v792 = vld [vmem:[%s10 + $0x10] sm:$0xf]
    %v793 = vld [vmem:[%s10 + $0x14] sm:$0xf]
    %v794 = vld [vmem:[%s10 + $0x18] sm:$0xf]
    %v795 = vld [vmem:[%s10 + $0x1c] sm:$0xf]
    %v796 = vpack.c.bf16 %v787, %v787
    %v797 = vld [vmem:[%s11] sm:$0x1]
    %v799 = vlaneseq
    %v800 = vshrl.u32 %v799, 7
    %v801 = vsub.s32 0, %v800
    %v802 = vrot.slane %v797, %v801
    %v812 = vunpack.c.l.b16 %v788
    %v813 = vunpack.c.l.b16 %v789
    %v814 = vunpack.c.l.b16 %v790
    %v815 = vunpack.c.l.b16 %v791
    %v816 = vunpack.c.l.b16 %v792
    %v817 = vunpack.c.l.b16 %v793
    %v818 = vunpack.c.l.b16 %v794
    %v819 = vunpack.c.l.b16 %v795
    %v820 = vpack.c.b16 %v813, %v812
    %v821 = vpack.c.b16 %v815, %v814
    %v822 = vpack.c.b16 %v817, %v816
    %v823 = vpack.c.b16 %v819, %v818
    %v829 = vsel %vm530, %v796, 0
    %831 = vmatprep.subr.bf16.mxu0 0
    %832 = vmatpush1.bf16.msra.mxu0 %v820
    %833 = vmatprep.subr.bf16.mxu0 0
    %834 = vmatpush1.bf16.msra.mxu0 %v821
    %835 = vmatprep.subr.bf16.mxu0 0
    %836 = vmatpush1.bf16.msra.mxu0 %v822
    %837 = vmatprep.subr.bf16.mxu0 0
    %838 = vmatpush1.bf16.msra.mxu0 %v823
    %839 = vmatprep.subr.bf16.mxu0 0
    %840 = vmatpush1.bf16.msra.mxu0 0
    %841 = vmatprep.subr.bf16.mxu0 0
    %842 = vmatpush1.bf16.msra.mxu0 0
    %843 = vmatprep.subr.bf16.mxu0 0
    %844 = vmatpush1.bf16.msra.mxu0 0
    %845 = vmatprep.subr.bf16.mxu0 0
    %846 = vmatpush1.bf16.msra.mxu0 0
    %847 = vmatprep.subr.bf16.mxu0 0
    %848 = vmatpush1.bf16.msra.mxu0 0
    %849 = vmatprep.subr.bf16.mxu0 0
    %850 = vmatpush1.bf16.msra.mxu0 0
    %851 = vmatprep.subr.bf16.mxu0 0
    %852 = vmatpush1.bf16.msra.mxu0 0
    %853 = vmatprep.subr.bf16.mxu0 0
    %854 = vmatpush1.bf16.msra.mxu0 0
    %855 = vmatprep.subr.bf16.mxu0 0
    %856 = vmatpush1.bf16.msra.mxu0 0
    %857 = vmatprep.subr.bf16.mxu0 0
    %858 = vmatpush1.bf16.msra.mxu0 0
    %859 = vmatprep.subr.bf16.mxu0 0
    %860 = vmatpush1.bf16.msra.mxu0 0
    %861 = vmatprep.subr.bf16.mxu0 0
    %862 = vmatpush1.bf16.msra.mxu0 0
    %863 = vmatprep.mubr.bf16.mxu0 0
    %864 = vmatmul.mubr.bf16.gmra.mrb[0].mxu0 %v829
    %v865 = vpop.f32.mrb[0].mxu0
    %v866 = vadd.f32 %v802, %v865
    %v867 = vpop.f32.mrb[0].mxu0
    %v868 = vpop.f32.mrb[0].mxu0
    %v869 = vpop.f32.mrb[0].mxu0
    %870 = vdwg.mxu0
    %v871 = vadd.f32 %v866, %v463
    %v872 = vld [vmem:[%s12] sm:$0x1]
    %v873 = vld [vmem:[%s13] sm:$0x1]
    %v874 = vsel %vm87, %v871, 0.0
    %875 = vadd.xlane.f32.xlu0 %v874
    %v876 = vpop.xlane.xlu0 %875
    %v877 = vmul.f32 %v876, %v436
    %v878 = vsub.f32 %v871, %v877
    %v879 = vmul.f32 %v878, %v878
    %v880 = vsel %vm87, %v879, 0.0
    %881 = vadd.xlane.f32.xlu0 %v880
    %v882 = vpop.xlane.xlu0 %881
    %v883 = vmul.f32 %v882, %v436
    %v884 = vadd.f32 %v883, 1e-05
    %v885 = vrsqrt.pop %v884
    %v886 = vmul.f32 %v878, %v885
    %v888 = vlaneseq
    %v889 = vshrl.u32 %v888, 7
    %v890 = vsub.s32 0, %v889
    %v891 = vrot.slane %v872, %v890
    %v893 = vmul.f32 %v886, %v891
    %v895 = vlaneseq
    %v896 = vshrl.u32 %v895, 7
    %v897 = vsub.s32 0, %v896
    %v898 = vrot.slane %v873, %v897
    %v900 = vadd.f32 %v893, %v898
    %v901 = vsel %vm462, 0.0, %v900
    %902 = vst.msk [vmem:[#allocation4] sm:$0xff] %vm87, %v901
    %s903 = scalar_lea.vmem %s1, 8
    %v904 = vld [vmem:[%s903] sm:$0xff]
    %s905 = sadd.s32 %s53, 1
    %s906 = sld [smem:[#allocation3 + %s905]]
    %v907 = vstv %s906
    %vm908 = vcmp.ge.s32.totalorder %v55, %v907
    %vm909 = vcmp.ge.s32.totalorder %v57, %v907
    %v910 = vld [vmem:[%s2] sm:$0xf]
    %v911 = vld [vmem:[%s2 + $0x4] sm:$0xf]
    %v912 = vld [vmem:[%s2 + $0x8] sm:$0xf]
    %v913 = vld [vmem:[%s2 + $0xc] sm:$0xf]
    %v914 = vpack.c.bf16 %v904, %v904
    %v915 = vld [vmem:[%s3] sm:$0x1]
    %v917 = vlaneseq
    %v918 = vshrl.u32 %v917, 7
    %v919 = vsub.s32 0, %v918
    %v920 = vrot.slane %v915, %v919
    %v926 = vunpack.c.l.b16 %v910
    %v927 = vunpack.c.l.b16 %v911
    %v928 = vunpack.c.l.b16 %v912
    %v929 = vunpack.c.l.b16 %v913
    %v930 = vpack.c.b16 %v927, %v926
    %v931 = vpack.c.b16 %v929, %v928
    %v935 = vsel %vm87, %v914, 0
    %937 = vmatprep.subr.bf16.mxu0 0
    %938 = vmatpush1.bf16.msra.mxu0 %v930
    %939 = vmatprep.subr.bf16.mxu0 0
    %940 = vmatpush1.bf16.msra.mxu0 %v931
    %941 = vmatprep.subr.bf16.mxu0 0
    %942 = vmatpush1.bf16.msra.mxu0 0
    %943 = vmatprep.subr.bf16.mxu0 0
    %944 = vmatpush1.bf16.msra.mxu0 0
    %945 = vmatprep.subr.bf16.mxu0 0
    %946 = vmatpush1.bf16.msra.mxu0 0
    %947 = vmatprep.subr.bf16.mxu0 0
    %948 = vmatpush1.bf16.msra.mxu0 0
    %949 = vmatprep.subr.bf16.mxu0 0
    %950 = vmatpush1.bf16.msra.mxu0 0
    %951 = vmatprep.subr.bf16.mxu0 0
    %952 = vmatpush1.bf16.msra.mxu0 0
    %953 = vmatprep.subr.bf16.mxu0 0
    %954 = vmatpush1.bf16.msra.mxu0 0
    %955 = vmatprep.subr.bf16.mxu0 0
    %956 = vmatpush1.bf16.msra.mxu0 0
    %957 = vmatprep.subr.bf16.mxu0 0
    %958 = vmatpush1.bf16.msra.mxu0 0
    %959 = vmatprep.subr.bf16.mxu0 0
    %960 = vmatpush1.bf16.msra.mxu0 0
    %961 = vmatprep.subr.bf16.mxu0 0
    %962 = vmatpush1.bf16.msra.mxu0 0
    %963 = vmatprep.subr.bf16.mxu0 0
    %964 = vmatpush1.bf16.msra.mxu0 0
    %965 = vmatprep.subr.bf16.mxu0 0
    %966 = vmatpush1.bf16.msra.mxu0 0
    %967 = vmatprep.subr.bf16.mxu0 0
    %968 = vmatpush1.bf16.msra.mxu0 0
    %969 = vmatprep.mubr.bf16.mxu0 0
    %970 = vmatmul.mubr.bf16.gmra.mrb[0].mxu0 %v935
    %v971 = vpop.f32.mrb[0].mxu0
    %v972 = vadd.f32 %v920, %v971
    %v973 = vpop.f32.mrb[0].mxu0
    %v974 = vpop.f32.mrb[0].mxu0
    %v975 = vpop.f32.mrb[0].mxu0
    %976 = vdwg.mxu0
    %v977 = vpack.c.bf16 %v972, %v972
    %979 = vrot.lane.b32.xlu0 %v977, 96
    %v980 = vpop.permute.xlu0 %979
    %v982 = vsel %vm135, %v977, 0
    %v985 = vsel %vm135, %v980, 0
    %987 = vmatprep.subr.bf16.mxu0 0
    %988 = vmatpush1.bf16.xpose.msra.mxu0 %v985
    %989 = vmatprep.subr.bf16.mxu0 0
    %990 = vmatpush1.bf16.xpose.msra.mxu0 0
    %991 = vmatprep.subr.bf16.mxu0 0
    %992 = vmatpush1.bf16.xpose.msra.mxu0 0
    %993 = vmatprep.subr.bf16.mxu0 0
    %994 = vmatpush1.bf16.xpose.msra.mxu0 0
    %995 = vmatprep.subr.bf16.mxu0 0
    %996 = vmatpush1.bf16.xpose.msra.mxu0 0
    %997 = vmatprep.subr.bf16.mxu0 0
    %998 = vmatpush1.bf16.xpose.msra.mxu0 0
    %999 = vmatprep.subr.bf16.mxu0 0
    %1000 = vmatpush1.bf16.xpose.msra.mxu0 0
    %1001 = vmatprep.subr.bf16.mxu0 0
    %1002 = vmatpush1.bf16.xpose.msra.mxu0 0
    %1003 = vmatprep.subr.bf16.mxu0 0
    %1004 = vmatpush1.bf16.xpose.msra.mxu0 0
    %1005 = vmatprep.subr.bf16.mxu0 0
    %1006 = vmatpush1.bf16.xpose.msra.mxu0 0
    %1007 = vmatprep.subr.bf16.mxu0 0
    %1008 = vmatpush1.bf16.xpose.msra.mxu0 0
    %1009 = vmatprep.subr.bf16.mxu0 0
    %1010 = vmatpush1.bf16.xpose.msra.mxu0 0
    %1011 = vmatprep.subr.bf16.mxu0 0
    %1012 = vmatpush1.bf16.xpose.msra.mxu0 0
    %1013 = vmatprep.subr.bf16.mxu0 0
    %1014 = vmatpush1.bf16.xpose.msra.mxu0 0
    %1015 = vmatprep.subr.bf16.mxu0 0
    %1016 = vmatpush1.bf16.xpose.msra.mxu0 0
    %1017 = vmatprep.subr.bf16.mxu0 0
    %1018 = vmatpush1.bf16.xpose.msra.mxu0 0
    %1019 = vmatprep.mubr.bf16.mxu0 0
    %1020 = vmatmul.mubr.bf16.gmra.mrb[0].mxu0 %v982
    %v1021 = vpop.f32.mrb[0].mxu0
    %v1022 = vadd.f32 0.0, %v1021
    %v1023 = vpop.f32.mrb[0].mxu0
    %v1024 = vpop.f32.mrb[0].mxu0
    %v1025 = vpop.f32.mrb[0].mxu0
    %1026 = vdwg.mxu0
    %v1027 = vmul.f32 %v1022, 0.25
    %v1028 = vsel %vm909, -1e+09, %v1027
    %v1029 = vsel %vm184, %v1028, -inf
    %1030 = vmax.xlane.f32.xlu0 %v1029
    %v1031 = vpop.xlane.xlu0 %1030
    %v1032 = vsub.f32 %v1028, %v1031
    %v1033 = vmul.f32 %v1032, 1.442695
    %v1034 = vpow.pop %v1033
    %v1035 = vsel %vm184, %v1034, 0.0
    %1036 = vadd.xlane.f32.xlu0 %v1035
    %v1037 = vpop.xlane.xlu0 %1036
    %v1038 = vrcp.pop %v1037
    %v1039 = vmul.f32 %v1034, %v1038
    %v1040 = vpack.c.bf16 %v1039, %v1039
    %1041 = vrot.lane.b32.xlu0 %v977, 64
    %v1042 = vpop.permute.xlu0 %1041
    %v1044 = vsel %vm184, %v1040, 0
    %v1047 = vsel %vm202, %v1042, 0
    %1049 = vmatprep.subr.bf16.mxu0 0
    %1050 = vmatpush1.bf16.msra.mxu0 %v1047
    %1051 = vmatprep.subr.bf16.mxu0 0
    %1052 = vmatpush1.bf16.msra.mxu0 0
    %1053 = vmatprep.subr.bf16.mxu0 0
    %1054 = vmatpush1.bf16.msra.mxu0 0
    %1055 = vmatprep.subr.bf16.mxu0 0
    %1056 = vmatpush1.bf16.msra.mxu0 0
    %1057 = vmatprep.subr.bf16.mxu0 0
    %1058 = vmatpush1.bf16.msra.mxu0 0
    %1059 = vmatprep.subr.bf16.mxu0 0
    %1060 = vmatpush1.bf16.msra.mxu0 0
    %1061 = vmatprep.subr.bf16.mxu0 0
    %1062 = vmatpush1.bf16.msra.mxu0 0
    %1063 = vmatprep.subr.bf16.mxu0 0
    %1064 = vmatpush1.bf16.msra.mxu0 0
    %1065 = vmatprep.subr.bf16.mxu0 0
    %1066 = vmatpush1.bf16.msra.mxu0 0
    %1067 = vmatprep.subr.bf16.mxu0 0
    %1068 = vmatpush1.bf16.msra.mxu0 0
    %1069 = vmatprep.subr.bf16.mxu0 0
    %1070 = vmatpush1.bf16.msra.mxu0 0
    %1071 = vmatprep.subr.bf16.mxu0 0
    %1072 = vmatpush1.bf16.msra.mxu0 0
    %1073 = vmatprep.subr.bf16.mxu0 0
    %1074 = vmatpush1.bf16.msra.mxu0 0
    %1075 = vmatprep.subr.bf16.mxu0 0
    %1076 = vmatpush1.bf16.msra.mxu0 0
    %1077 = vmatprep.subr.bf16.mxu0 0
    %1078 = vmatpush1.bf16.msra.mxu0 0
    %1079 = vmatprep.subr.bf16.mxu0 0
    %1080 = vmatpush1.bf16.msra.mxu0 0
    %1081 = vmatprep.mubr.bf16.mxu0 0
    %1082 = vmatmul.mubr.bf16.gmra.mrb[0].mxu0 %v1044
    %v1083 = vpop.f32.mrb[0].mxu0
    %v1084 = vadd.f32 0.0, %v1083
    %v1085 = vpop.f32.mrb[0].mxu0
    %v1086 = vpop.f32.mrb[0].mxu0
    %v1087 = vpop.f32.mrb[0].mxu0
    %1088 = vdwg.mxu0
    %1089 = vrot.lane.b32.xlu0 %v977, 112
    %v1090 = vpop.permute.xlu0 %1089
    %1091 = vrot.lane.b32.xlu0 %v977, 80
    %v1092 = vpop.permute.xlu0 %1091
    %v1094 = vsel %vm135, %v1090, 0
    %v1097 = vsel %vm135, %v1092, 0
    %1099 = vmatprep.subr.bf16.mxu0 0
    %1100 = vmatpush1.bf16.xpose.msra.mxu0 %v1097
    %1101 = vmatprep.subr.bf16.mxu0 0
    %1102 = vmatpush1.bf16.xpose.msra.mxu0 0
    %1103 = vmatprep.subr.bf16.mxu0 0
    %1104 = vmatpush1.bf16.xpose.msra.mxu0 0
    %1105 = vmatprep.subr.bf16.mxu0 0
    %1106 = vmatpush1.bf16.xpose.msra.mxu0 0
    %1107 = vmatprep.subr.bf16.mxu0 0
    %1108 = vmatpush1.bf16.xpose.msra.mxu0 0
    %1109 = vmatprep.subr.bf16.mxu0 0
    %1110 = vmatpush1.bf16.xpose.msra.mxu0 0
    %1111 = vmatprep.subr.bf16.mxu0 0
    %1112 = vmatpush1.bf16.xpose.msra.mxu0 0
    %1113 = vmatprep.subr.bf16.mxu0 0
    %1114 = vmatpush1.bf16.xpose.msra.mxu0 0
    %1115 = vmatprep.subr.bf16.mxu0 0
    %1116 = vmatpush1.bf16.xpose.msra.mxu0 0
    %1117 = vmatprep.subr.bf16.mxu0 0
    %1118 = vmatpush1.bf16.xpose.msra.mxu0 0
    %1119 = vmatprep.subr.bf16.mxu0 0
    %1120 = vmatpush1.bf16.xpose.msra.mxu0 0
    %1121 = vmatprep.subr.bf16.mxu0 0
    %1122 = vmatpush1.bf16.xpose.msra.mxu0 0
    %1123 = vmatprep.subr.bf16.mxu0 0
    %1124 = vmatpush1.bf16.xpose.msra.mxu0 0
    %1125 = vmatprep.subr.bf16.mxu0 0
    %1126 = vmatpush1.bf16.xpose.msra.mxu0 0
    %1127 = vmatprep.subr.bf16.mxu0 0
    %1128 = vmatpush1.bf16.xpose.msra.mxu0 0
    %1129 = vmatprep.subr.bf16.mxu0 0
    %1130 = vmatpush1.bf16.xpose.msra.mxu0 0
    %1131 = vmatprep.mubr.bf16.mxu0 0
    %1132 = vmatmul.mubr.bf16.gmra.mrb[0].mxu0 %v1094
    %v1133 = vpop.f32.mrb[0].mxu0
    %v1134 = vadd.f32 0.0, %v1133
    %v1135 = vpop.f32.mrb[0].mxu0
    %v1136 = vpop.f32.mrb[0].mxu0
    %v1137 = vpop.f32.mrb[0].mxu0
    %1138 = vdwg.mxu0
    %v1139 = vmul.f32 %v1134, 0.25
    %v1140 = vsel %vm909, -1e+09, %v1139
    %v1141 = vsel %vm184, %v1140, -inf
    %1142 = vmax.xlane.f32.xlu0 %v1141
    %v1143 = vpop.xlane.xlu0 %1142
    %v1144 = vsub.f32 %v1140, %v1143
    %v1145 = vmul.f32 %v1144, 1.442695
    %v1146 = vpow.pop %v1145
    %v1147 = vsel %vm184, %v1146, 0.0
    %1148 = vadd.xlane.f32.xlu0 %v1147
    %v1149 = vpop.xlane.xlu0 %1148
    %v1150 = vrcp.pop %v1149
    %v1151 = vmul.f32 %v1146, %v1150
    %v1152 = vpack.c.bf16 %v1151, %v1151
    %1153 = vrot.lane.b32.xlu0 %v977, 48
    %v1154 = vpop.permute.xlu0 %1153
    %v1156 = vsel %vm184, %v1152, 0
    %v1159 = vsel %vm202, %v1154, 0
    %1161 = vmatprep.subr.bf16.mxu0 0
    %1162 = vmatpush1.bf16.msra.mxu0 %v1159
    %1163 = vmatprep.subr.bf16.mxu0 0
    %1164 = vmatpush1.bf16.msra.mxu0 0
    %1165 = vmatprep.subr.bf16.mxu0 0
    %1166 = vmatpush1.bf16.msra.mxu0 0
    %1167 = vmatprep.subr.bf16.mxu0 0
    %1168 = vmatpush1.bf16.msra.mxu0 0
    %1169 = vmatprep.subr.bf16.mxu0 0
    %1170 = vmatpush1.bf16.msra.mxu0 0
    %1171 = vmatprep.subr.bf16.mxu0 0
    %1172 = vmatpush1.bf16.msra.mxu0 0
    %1173 = vmatprep.subr.bf16.mxu0 0
    %1174 = vmatpush1.bf16.msra.mxu0 0
    %1175 = vmatprep.subr.bf16.mxu0 0
    %1176 = vmatpush1.bf16.msra.mxu0 0
    %1177 = vmatprep.subr.bf16.mxu0 0
    %1178 = vmatpush1.bf16.msra.mxu0 0
    %1179 = vmatprep.subr.bf16.mxu0 0
    %1180 = vmatpush1.bf16.msra.mxu0 0
    %1181 = vmatprep.subr.bf16.mxu0 0
    %1182 = vmatpush1.bf16.msra.mxu0 0
    %1183 = vmatprep.subr.bf16.mxu0 0
    %1184 = vmatpush1.bf16.msra.mxu0 0
    %1185 = vmatprep.subr.bf16.mxu0 0
    %1186 = vmatpush1.bf16.msra.mxu0 0
    %1187 = vmatprep.subr.bf16.mxu0 0
    %1188 = vmatpush1.bf16.msra.mxu0 0
    %1189 = vmatprep.subr.bf16.mxu0 0
    %1190 = vmatpush1.bf16.msra.mxu0 0
    %1191 = vmatprep.subr.bf16.mxu0 0
    %1192 = vmatpush1.bf16.msra.mxu0 0
    %1193 = vmatprep.mubr.bf16.mxu0 0
    %1194 = vmatmul.mubr.bf16.gmra.mrb[0].mxu0 %v1156
    %v1195 = vpop.f32.mrb[0].mxu0
    %v1196 = vadd.f32 0.0, %v1195
    %v1197 = vpop.f32.mrb[0].mxu0
    %v1198 = vpop.f32.mrb[0].mxu0
    %v1199 = vpop.f32.mrb[0].mxu0
    %1200 = vdwg.mxu0
    %1202 = vrot.lane.b32.xlu0 %v1196, 16
    %v1203 = vpop.permute.xlu0 %1202
    %v1205 = vsel %vm135, %v1084, %v1203
    %v1206 = vld [vmem:[%s4] sm:$0xf]
    %v1207 = vld [vmem:[%s4 + $0x4] sm:$0xf]
    %v1208 = vld [vmem:[%s4 + $0x8] sm:$0xf]
    %v1209 = vld [vmem:[%s4 + $0xc] sm:$0xf]
    %v1210 = vpack.c.bf16 %v1205, %v1205
    %v1211 = vld [vmem:[%s5] sm:$0x1]
    %v1213 = vlaneseq
    %v1214 = vshrl.u32 %v1213, 7
    %v1215 = vsub.s32 0, %v1214
    %v1216 = vrot.slane %v1211, %v1215
    %v1222 = vunpack.c.l.b16 %v1206
    %v1223 = vunpack.c.l.b16 %v1207
    %v1224 = vunpack.c.l.b16 %v1208
    %v1225 = vunpack.c.l.b16 %v1209
    %v1226 = vpack.c.b16 %v1223, %v1222
    %v1227 = vpack.c.b16 %v1225, %v1224
    %v1231 = vsel %vm87, %v1210, 0
    %1233 = vmatprep.subr.bf16.mxu0 0
    %1234 = vmatpush1.bf16.msra.mxu0 %v1226
    %1235 = vmatprep.subr.bf16.mxu0 0
    %1236 = vmatpush1.bf16.msra.mxu0 %v1227
    %1237 = vmatprep.subr.bf16.mxu0 0
    %1238 = vmatpush1.bf16.msra.mxu0 0
    %1239 = vmatprep.subr.bf16.mxu0 0
    %1240 = vmatpush1.bf16.msra.mxu0 0
    %1241 = vmatprep.subr.bf16.mxu0 0
    %1242 = vmatpush1.bf16.msra.mxu0 0
    %1243 = vmatprep.subr.bf16.mxu0 0
    %1244 = vmatpush1.bf16.msra.mxu0 0
    %1245 = vmatprep.subr.bf16.mxu0 0
    %1246 = vmatpush1.bf16.msra.mxu0 0
    %1247 = vmatprep.subr.bf16.mxu0 0
    %1248 = vmatpush1.bf16.msra.mxu0 0
    %1249 = vmatprep.subr.bf16.mxu0 0
    %1250 = vmatpush1.bf16.msra.mxu0 0
    %1251 = vmatprep.subr.bf16.mxu0 0
    %1252 = vmatpush1.bf16.msra.mxu0 0
    %1253 = vmatprep.subr.bf16.mxu0 0
    %1254 = vmatpush1.bf16.msra.mxu0 0
    %1255 = vmatprep.subr.bf16.mxu0 0
    %1256 = vmatpush1.bf16.msra.mxu0 0
    %1257 = vmatprep.subr.bf16.mxu0 0
    %1258 = vmatpush1.bf16.msra.mxu0 0
    %1259 = vmatprep.subr.bf16.mxu0 0
    %1260 = vmatpush1.bf16.msra.mxu0 0
    %1261 = vmatprep.subr.bf16.mxu0 0
    %1262 = vmatpush1.bf16.msra.mxu0 0
    %1263 = vmatprep.subr.bf16.mxu0 0
    %1264 = vmatpush1.bf16.msra.mxu0 0
    %1265 = vmatprep.mubr.bf16.mxu0 0
    %1266 = vmatmul.mubr.bf16.gmra.mrb[0].mxu0 %v1231
    %v1267 = vpop.f32.mrb[0].mxu0
    %v1268 = vadd.f32 %v1216, %v1267
    %v1269 = vpop.f32.mrb[0].mxu0
    %v1270 = vpop.f32.mrb[0].mxu0
    %v1271 = vpop.f32.mrb[0].mxu0
    %1272 = vdwg.mxu0
    %v1273 = vadd.f32 %v1268, %v904
    %v1274 = vld [vmem:[%s6] sm:$0x1]
    %v1275 = vld [vmem:[%s7] sm:$0x1]
    %v1276 = vsel %vm87, %v1273, 0.0
    %1277 = vadd.xlane.f32.xlu0 %v1276
    %v1278 = vpop.xlane.xlu0 %1277
    %v1279 = vmul.f32 %v1278, %v436
    %v1280 = vsub.f32 %v1273, %v1279
    %v1281 = vmul.f32 %v1280, %v1280
    %v1282 = vsel %vm87, %v1281, 0.0
    %1283 = vadd.xlane.f32.xlu0 %v1282
    %v1284 = vpop.xlane.xlu0 %1283
    %v1285 = vmul.f32 %v1284, %v436
    %v1286 = vadd.f32 %v1285, 1e-05
    %v1287 = vrsqrt.pop %v1286
    %v1288 = vmul.f32 %v1280, %v1287
    %v1290 = vlaneseq
    %v1291 = vshrl.u32 %v1290, 7
    %v1292 = vsub.s32 0, %v1291
    %v1293 = vrot.slane %v1274, %v1292
    %v1295 = vmul.f32 %v1288, %v1293
    %v1297 = vlaneseq
    %v1298 = vshrl.u32 %v1297, 7
    %v1299 = vsub.s32 0, %v1298
    %v1300 = vrot.slane %v1275, %v1299
    %v1302 = vadd.f32 %v1295, %v1300
    %v1303 = vsel %vm908, 1, 0
    %vm1304 = vcmp.eq.s32.totalorder %v1303, 1
    %v1305 = vsel %vm1304, 0.0, %v1302
    %v1307 = vrot.slane %v1305, 1
    %v1308 = vsel %vm466, %v467, %v1307
    %1309 = vrot.lane.b32.xlu0 %v1308, 32
    %v1310 = vpop.permute.xlu0 %1309
    %1311 = vrot.lane.b32.xlu0 %v1307, 32
    %v1312 = vpop.permute.xlu0 %1311
    %v1315 = vrot.slane %v1305, 2
    %v1316 = vsel %vm476, %v477, %v1315
    %1317 = vrot.lane.b32.xlu0 %v1316, 64
    %v1318 = vpop.permute.xlu0 %1317
    %1319 = vrot.lane.b32.xlu0 %v1315, 64
    %v1320 = vpop.permute.xlu0 %1319
    %v1323 = vrot.slane %v1305, 3
    %v1324 = vsel %vm486, %v487, %v1323
    %1325 = vrot.lane.b32.xlu0 %v1324, 96
    %v1326 = vpop.permute.xlu0 %1325
    %1327 = vrot.lane.b32.xlu0 %v1323, 96
    %v1328 = vpop.permute.xlu0 %1327
    %v1331 = vrot.slane %v1305, 4
    %v1333 = vrot.slane %v1305, 5
    %v1334 = vsel %vm498, %v1333, %v500
    %1335 = vrot.lane.b32.xlu0 %v1333, 32
    %v1336 = vpop.permute.xlu0 %1335
    %1337 = vrot.lane.b32.xlu0 %v1334, 32
    %v1338 = vpop.permute.xlu0 %1337
    %v1341 = vrot.slane %v1305, 6
    %v1342 = vsel %vm508, %v1341, %v510
    %1343 = vrot.lane.b32.xlu0 %v1341, 64
    %v1344 = vpop.permute.xlu0 %1343
    %1345 = vrot.lane.b32.xlu0 %v1342, 64
    %v1346 = vpop.permute.xlu0 %1345
    %v1349 = vrot.slane %v1305, 7
    %v1350 = vsel %vm518, %v1349, %v520
    %1351 = vrot.lane.b32.xlu0 %v1349, 96
    %v1352 = vpop.permute.xlu0 %1351
    %1353 = vrot.lane.b32.xlu0 %v1350, 96
    %v1354 = vpop.permute.xlu0 %1353
    %v1357 = vsel %vm87, 0.0, %v1310
    %v1358 = vsel %vm87, %v1305, %v1312
    %v1359 = vsel %vm530, %v1357, %v1318
    %v1360 = vsel %vm530, %v1358, %v1320
    %v1361 = vsel %vm533, %v1359, %v1326
    %v1362 = vsel %vm533, %v1360, %v1328
    %v1363 = vsel %vm87, %v1331, %v1336
    %v1364 = vsel %vm87, %v1331, %v1338
    %v1365 = vsel %vm530, %v1363, %v1344
    %v1366 = vsel %vm530, %v1364, %v1346
    %v1367 = vsel %vm533, %v1365, %v1352
    %v1368 = vsel %vm533, %v1366, %v1354
    %v1369 = vld [vmem:[%s8] sm:$0xf]
    %v1370 = vld [vmem:[%s8 + $0x4] sm:$0xf]
    %v1371 = vld [vmem:[%s8 + $0x8] sm:$0xf]
    %v1372 = vld [vmem:[%s8 + $0xc] sm:$0xf]
    %v1373 = vld [vmem:[%s8 + $0x10] sm:$0xf]
    %v1374 = vld [vmem:[%s8 + $0x14] sm:$0xf]
    %v1375 = vld [vmem:[%s8 + $0x18] sm:$0xf]
    %v1376 = vld [vmem:[%s8 + $0x1c] sm:$0xf]
    %v1377 = vld [vmem:[%s8 + $0x20] sm:$0xf]
    %v1378 = vld [vmem:[%s8 + $0x24] sm:$0xf]
    %v1379 = vld [vmem:[%s8 + $0x28] sm:$0xf]
    %v1380 = vld [vmem:[%s8 + $0x2c] sm:$0xf]
    %v1381 = vld [vmem:[%s8 + $0x30] sm:$0xf]
    %v1382 = vld [vmem:[%s8 + $0x34] sm:$0xf]
    %v1383 = vld [vmem:[%s8 + $0x38] sm:$0xf]
    %v1384 = vld [vmem:[%s8 + $0x3c] sm:$0xf]
    %v1385 = vld [vmem:[%s8 + $0x40] sm:$0xf]
    %v1386 = vld [vmem:[%s8 + $0x44] sm:$0xf]
    %v1387 = vld [vmem:[%s8 + $0x48] sm:$0xf]
    %v1388 = vld [vmem:[%s8 + $0x4c] sm:$0xf]
    %v1389 = vld [vmem:[%s8 + $0x50] sm:$0xf]
    %v1390 = vld [vmem:[%s8 + $0x54] sm:$0xf]
    %v1391 = vld [vmem:[%s8 + $0x58] sm:$0xf]
    %v1392 = vld [vmem:[%s8 + $0x5c] sm:$0xf]
    %v1393 = vld [vmem:[%s8 + $0x60] sm:$0xf]
    %v1394 = vld [vmem:[%s8 + $0x64] sm:$0xf]
    %v1395 = vld [vmem:[%s8 + $0x68] sm:$0xf]
    %v1396 = vld [vmem:[%s8 + $0x6c] sm:$0xf]
    %v1397 = vld [vmem:[%s8 + $0x70] sm:$0xf]
    %v1398 = vld [vmem:[%s8 + $0x74] sm:$0xf]
    %v1399 = vld [vmem:[%s8 + $0x78] sm:$0xf]
    %v1400 = vld [vmem:[%s8 + $0x7c] sm:$0xf]
    %v1401 = vld [vmem:[%s8 + $0x80] sm:$0xf]
    %v1402 = vld [vmem:[%s8 + $0x84] sm:$0xf]
    %v1403 = vld [vmem:[%s8 + $0x88] sm:$0xf]
    %v1404 = vld [vmem:[%s8 + $0x8c] sm:$0xf]
    %v1405 = vpack.c.bf16 %v1362, %v1361
    %v1406 = vpack.c.bf16 %v1368, %v1367
    %v1407 = vpack.c.bf16 0.0, %v1305
    %v1408 = vld [vmem:[%s9] sm:$0x1]
    %v1410 = vlaneseq
    %v1411 = vshrl.u32 %v1410, 7
    %v1412 = vsub.s32 0, %v1411
    %v1413 = vrot.slane %v1408, %v1412
    %v1418 = vrot.slane %v1405, 2
    %v1419 = vrot.slane %v1406, 2
    %v1420 = vrot.slane %v1407, 2
    %v1459 = vunpack.c.l.b16 %v1369
    %v1460 = vunpack.c.l.b16 %v1370
    %v1461 = vunpack.c.l.b16 %v1371
    %v1462 = vunpack.c.l.b16 %v1372
    %v1463 = vunpack.c.l.b16 %v1373
    %v1464 = vunpack.c.l.b16 %v1374
    %v1465 = vunpack.c.l.b16 %v1375
    %v1466 = vunpack.c.l.b16 %v1376
    %v1467 = vunpack.c.l.b16 %v1377
    %v1468 = vunpack.c.l.b16 %v1378
    %v1469 = vunpack.c.l.b16 %v1379
    %v1470 = vunpack.c.l.b16 %v1380
    %v1471 = vunpack.c.l.b16 %v1381
    %v1472 = vunpack.c.l.b16 %v1382
    %v1473 = vunpack.c.l.b16 %v1383
    %v1474 = vunpack.c.l.b16 %v1384
    %v1475 = vunpack.c.l.b16 %v1385
    %v1476 = vunpack.c.l.b16 %v1386
    %v1477 = vunpack.c.l.b16 %v1387
    %v1478 = vunpack.c.l.b16 %v1388
    %v1479 = vunpack.c.l.b16 %v1389
    %v1480 = vunpack.c.l.b16 %v1390
    %v1481 = vunpack.c.l.b16 %v1391
    %v1482 = vunpack.c.l.b16 %v1392
    %v1483 = vunpack.c.l.b16 %v1393
    %v1484 = vunpack.c.l.b16 %v1394
    %v1485 = vunpack.c.l.b16 %v1395
    %v1486 = vunpack.c.l.b16 %v1396
    %v1487 = vunpack.c.l.b16 %v1397
    %v1488 = vunpack.c.l.b16 %v1398
    %v1489 = vunpack.c.l.b16 %v1399
    %v1490 = vunpack.c.l.b16 %v1400
    %v1491 = vunpack.c.l.b16 %v1401
    %v1492 = vunpack.c.l.b16 %v1402
    %v1493 = vunpack.c.l.b16 %v1403
    %v1494 = vunpack.c.l.b16 %v1404
    %v1495 = vpack.c.b16 %v1460, %v1459
    %v1496 = vpack.c.b16 %v1462, %v1461
    %v1497 = vpack.c.b16 %v1464, %v1463
    %v1498 = vpack.c.b16 %v1466, %v1465
    %v1499 = vpack.c.b16 %v1468, %v1467
    %v1500 = vpack.c.b16 %v1470, %v1469
    %v1501 = vpack.c.b16 %v1472, %v1471
    %v1502 = vpack.c.b16 %v1474, %v1473
    %v1503 = vpack.c.b16 %v1476, %v1475
    %v1504 = vpack.c.b16 %v1478, %v1477
    %v1505 = vpack.c.b16 %v1480, %v1479
    %v1506 = vpack.c.b16 %v1482, %v1481
    %v1507 = vpack.c.b16 %v1484, %v1483
    %v1508 = vpack.c.b16 %v1486, %v1485
    %v1509 = vpack.c.b16 %v1488, %v1487
    %v1510 = vpack.c.b16 %v1490, %v1489
    %v1511 = vpack.c.b16 %v1492, %v1491
    %v1512 = vpack.c.b16 %v1494, %v1493
    %v1532 = vsel %vm87, %v1420, 0
    %1534 = vmatprep.subr.bf16.mxu0 0
    %1535 = vmatpush1.bf16.msra.mxu0 %v1495
    %1536 = vmatprep.subr.bf16.mxu0 0
    %1537 = vmatpush1.bf16.msra.mxu0 %v1496
    %1538 = vmatprep.subr.bf16.mxu0 0
    %1539 = vmatpush1.bf16.msra.mxu0 %v1497
    %1540 = vmatprep.subr.bf16.mxu0 0
    %1541 = vmatpush1.bf16.msra.mxu0 %v1498
    %1542 = vmatprep.subr.bf16.mxu0 0
    %1543 = vmatpush1.bf16.msra.mxu0 %v1499
    %1544 = vmatprep.subr.bf16.mxu0 0
    %1545 = vmatpush1.bf16.msra.mxu0 %v1500
    %1546 = vmatprep.subr.bf16.mxu0 0
    %1547 = vmatpush1.bf16.msra.mxu0 %v1501
    %1548 = vmatprep.subr.bf16.mxu0 0
    %1549 = vmatpush1.bf16.msra.mxu0 %v1502
    %1550 = vmatprep.subr.bf16.mxu0 0
    %1551 = vmatpush1.bf16.msra.mxu0 %v1503
    %1552 = vmatprep.subr.bf16.mxu0 0
    %1553 = vmatpush1.bf16.msra.mxu0 %v1504
    %1554 = vmatprep.subr.bf16.mxu0 0
    %1555 = vmatpush1.bf16.msra.mxu0 %v1505
    %1556 = vmatprep.subr.bf16.mxu0 0
    %1557 = vmatpush1.bf16.msra.mxu0 %v1506
    %1558 = vmatprep.subr.bf16.mxu0 0
    %1559 = vmatpush1.bf16.msra.mxu0 %v1507
    %1560 = vmatprep.subr.bf16.mxu0 0
    %1561 = vmatpush1.bf16.msra.mxu0 %v1508
    %1562 = vmatprep.subr.bf16.mxu0 0
    %1563 = vmatpush1.bf16.msra.mxu0 %v1509
    %1564 = vmatprep.subr.bf16.mxu0 0
    %1565 = vmatpush1.bf16.msra.mxu0 %v1510
    %1566 = vmatprep.mubr.bf16.mxu0 %v1419
    %1567 = vmatmul.mubr.bf16.gmra.mrb[0].mxu0 %v1418
    %v1568 = vpop.f32.mrb[0].mxu0
    %v1569 = vadd.f32 %v1413, %v1568
    %v1570 = vpop.f32.mrb[0].mxu0
    %v1571 = vpop.f32.mrb[0].mxu0
    %v1572 = vpop.f32.mrb[0].mxu0
    %1573 = vdwg.mxu0
    %1574 = vmatprep.subr.bf16.mxu0 0
    %1575 = vmatpush1.bf16.msra.mxu0 %v1511
    %1576 = vmatprep.subr.bf16.mxu0 0
    %1577 = vmatpush1.bf16.msra.mxu0 %v1512
    %1578 = vmatprep.subr.bf16.mxu0 0
    %1579 = vmatpush1.bf16.msra.mxu0 0
    %1580 = vmatprep.subr.bf16.mxu0 0
    %1581 = vmatpush1.bf16.msra.mxu0 0
    %1582 = vmatprep.subr.bf16.mxu0 0
    %1583 = vmatpush1.bf16.msra.mxu0 0
    %1584 = vmatprep.subr.bf16.mxu0 0
    %1585 = vmatpush1.bf16.msra.mxu0 0
    %1586 = vmatprep.subr.bf16.mxu0 0
    %1587 = vmatpush1.bf16.msra.mxu0 0
    %1588 = vmatprep.subr.bf16.mxu0 0
    %1589 = vmatpush1.bf16.msra.mxu0 0
    %1590 = vmatprep.subr.bf16.mxu0 0
    %1591 = vmatpush1.bf16.msra.mxu0 0
    %1592 = vmatprep.subr.bf16.mxu0 0
    %1593 = vmatpush1.bf16.msra.mxu0 0
    %1594 = vmatprep.subr.bf16.mxu0 0
    %1595 = vmatpush1.bf16.msra.mxu0 0
    %1596 = vmatprep.subr.bf16.mxu0 0
    %1597 = vmatpush1.bf16.msra.mxu0 0
    %1598 = vmatprep.subr.bf16.mxu0 0
    %1599 = vmatpush1.bf16.msra.mxu0 0
    %1600 = vmatprep.subr.bf16.mxu0 0
    %1601 = vmatpush1.bf16.msra.mxu0 0
    %1602 = vmatprep.subr.bf16.mxu0 0
    %1603 = vmatpush1.bf16.msra.mxu0 0
    %1604 = vmatprep.subr.bf16.mxu0 0
    %1605 = vmatpush1.bf16.msra.mxu0 0
    %1606 = vmatprep.mubr.bf16.mxu0 0
    %1607 = vmatmul.mubr.bf16.gmra.mrb[0].mxu0 %v1532
    %v1608 = vpop.f32.mrb[0].mxu0
    %v1609 = vadd.f32 %v1569, %v1608
    %v1610 = vpop.f32.mrb[0].mxu0
    %v1611 = vpop.f32.mrb[0].mxu0
    %v1612 = vpop.f32.mrb[0].mxu0
    %1613 = vdwg.mxu0
    %v1614 = vmax.f32 %v1609, 0.0
    %v1615 = vld [vmem:[%s10] sm:$0xf]
    %v1616 = vld [vmem:[%s10 + $0x4] sm:$0xf]
    %v1617 = vld [vmem:[%s10 + $0x8] sm:$0xf]
    %v1618 = vld [vmem:[%s10 + $0xc] sm:$0xf]
    %v1619 = vld [vmem:[%s10 + $0x10] sm:$0xf]
    %v1620 = vld [vmem:[%s10 + $0x14] sm:$0xf]
    %v1621 = vld [vmem:[%s10 + $0x18] sm:$0xf]
    %v1622 = vld [vmem:[%s10 + $0x1c] sm:$0xf]
    %v1623 = vpack.c.bf16 %v1614, %v1614
    %v1624 = vld [vmem:[%s11] sm:$0x1]
    %v1626 = vlaneseq
    %v1627 = vshrl.u32 %v1626, 7
    %v1628 = vsub.s32 0, %v1627
    %v1629 = vrot.slane %v1624, %v1628
    %v1639 = vunpack.c.l.b16 %v1615
    %v1640 = vunpack.c.l.b16 %v1616
    %v1641 = vunpack.c.l.b16 %v1617
    %v1642 = vunpack.c.l.b16 %v1618
    %v1643 = vunpack.c.l.b16 %v1619
    %v1644 = vunpack.c.l.b16 %v1620
    %v1645 = vunpack.c.l.b16 %v1621
    %v1646 = vunpack.c.l.b16 %v1622
    %v1647 = vpack.c.b16 %v1640, %v1639
    %v1648 = vpack.c.b16 %v1642, %v1641
    %v1649 = vpack.c.b16 %v1644, %v1643
    %v1650 = vpack.c.b16 %v1646, %v1645
    %v1656 = vsel %vm530, %v1623, 0
    %1658 = vmatprep.subr.bf16.mxu0 0
    %1659 = vmatpush1.bf16.msra.mxu0 %v1647
    %1660 = vmatprep.subr.bf16.mxu0 0
    %1661 = vmatpush1.bf16.msra.mxu0 %v1648
    %1662 = vmatprep.subr.bf16.mxu0 0
    %1663 = vmatpush1.bf16.msra.mxu0 %v1649
    %1664 = vmatprep.subr.bf16.mxu0 0
    %1665 = vmatpush1.bf16.msra.mxu0 %v1650
    %1666 = vmatprep.subr.bf16.mxu0 0
    %1667 = vmatpush1.bf16.msra.mxu0 0
    %1668 = vmatprep.subr.bf16.mxu0 0
    %1669 = vmatpush1.bf16.msra.mxu0 0
    %1670 = vmatprep.subr.bf16.mxu0 0
    %1671 = vmatpush1.bf16.msra.mxu0 0
    %1672 = vmatprep.subr.bf16.mxu0 0
    %1673 = vmatpush1.bf16.msra.mxu0 0
    %1674 = vmatprep.subr.bf16.mxu0 0
    %1675 = vmatpush1.bf16.msra.mxu0 0
    %1676 = vmatprep.subr.bf16.mxu0 0
    %1677 = vmatpush1.bf16.msra.mxu0 0
    %1678 = vmatprep.subr.bf16.mxu0 0
    %1679 = vmatpush1.bf16.msra.mxu0 0
    %1680 = vmatprep.subr.bf16.mxu0 0
    %1681 = vmatpush1.bf16.msra.mxu0 0
    %1682 = vmatprep.subr.bf16.mxu0 0
    %1683 = vmatpush1.bf16.msra.mxu0 0
    %1684 = vmatprep.subr.bf16.mxu0 0
    %1685 = vmatpush1.bf16.msra.mxu0 0
    %1686 = vmatprep.subr.bf16.mxu0 0
    %1687 = vmatpush1.bf16.msra.mxu0 0
    %1688 = vmatprep.subr.bf16.mxu0 0
    %1689 = vmatpush1.bf16.msra.mxu0 0
    %1690 = vmatprep.mubr.bf16.mxu0 0
    %1691 = vmatmul.mubr.bf16.gmra.mrb[0].mxu0 %v1656
    %v1692 = vpop.f32.mrb[0].mxu0
    %v1693 = vadd.f32 %v1629, %v1692
    %v1694 = vpop.f32.mrb[0].mxu0
    %v1695 = vpop.f32.mrb[0].mxu0
    %v1696 = vpop.f32.mrb[0].mxu0
    %1697 = vdwg.mxu0
    %v1698 = vadd.f32 %v1693, %v1305
    %v1699 = vld [vmem:[%s12] sm:$0x1]
    %v1700 = vld [vmem:[%s13] sm:$0x1]
    %v1701 = vsel %vm87, %v1698, 0.0
    %1702 = vadd.xlane.f32.xlu0 %v1701
    %v1703 = vpop.xlane.xlu0 %1702
    %v1704 = vmul.f32 %v1703, %v436
    %v1705 = vsub.f32 %v1698, %v1704
    %v1706 = vmul.f32 %v1705, %v1705
    %v1707 = vsel %vm87, %v1706, 0.0
    %1708 = vadd.xlane.f32.xlu0 %v1707
    %v1709 = vpop.xlane.xlu0 %1708
    %v1710 = vmul.f32 %v1709, %v436
    %v1711 = vadd.f32 %v1710, 1e-05
    %v1712 = vrsqrt.pop %v1711
    %v1713 = vmul.f32 %v1705, %v1712
    %v1715 = vlaneseq
    %v1716 = vshrl.u32 %v1715, 7
    %v1717 = vsub.s32 0, %v1716
    %v1718 = vrot.slane %v1699, %v1717
    %v1720 = vmul.f32 %v1713, %v1718
    %v1722 = vlaneseq
    %v1723 = vshrl.u32 %v1722, 7
    %v1724 = vsub.s32 0, %v1723
    %v1725 = vrot.slane %v1700, %v1724
    %v1727 = vadd.f32 %v1720, %v1725
    %v1728 = vsel %vm1304, 0.0, %v1727
    %s1729 = scalar_lea.vmem [#allocation4], 8
    %1730 = vst.msk [vmem:[%s1729] sm:$0xff] %vm87, %v1728
    // Predicated region
    $region54: #{tpu_custom_call.1} parent=1 // pred_check
      _
    $region55: #{tpu_custom_call.1} parent=1 // pred_check_branch
      %1732 = sbr.rel (0) target = $region57
    $region56: #{tpu_custom_call.1} parent=1 // pred_region
      %s1734 = ssub.s32 256, 256
      %1735 = vsyncadd [#allocation5], %s1734
      %s1736 = sshll.u32 [#allocation4], 4
      %s1737 = int_to_ptr.vmem [resolvable:$true] %s1736
      %1742 = dma.vmem_to_hbm [thread:$0]  %s1737, 256, %s14, [#allocation5], 128, 128, 8
    $region57: #{tpu_custom_call.1} parent=1 // pred_fallthru
      _
    // Predicated region
    $region58: #{tpu_custom_call.1} parent=1 // pred_check
      _
    $region59: #{tpu_custom_call.1} parent=1 // pred_check_branch
      %1744 = sbr.rel (0) target = $region61
    $region60: #{tpu_custom_call.1} parent=1 // pred_region
      %1745 = dma.done [#allocation5], 256
    $region61: #{tpu_custom_call.1} parent=1 // pred_fallthru
      _
    %1746 = vsyncpa [#allocation5], 1

</llo_original>
